<compile_context>
chip_gen: v7x
topology: tpu7x:2x2x1
jax: 0.10.0
libtpu: 0.0.40
codegen_flags: <defaults>
</compile_context>

<pallas_src>
import jax
import jax.numpy as jnp
import numpy as np
from jax import lax
from jax.experimental import pallas as pl
from jax.experimental.pallas import tpu as pltpu

N_CLASSES = 10
H = W = 5                        # width=5, height=5
P = H * W                        # 25 spatial positions
C0, C1, C2, C3 = 30, 15, 7, 5    # depth, depth//2, depth//4, 5
FEAT = P * C3                    # 125


def _round_up(n, m):
    return ((n + m - 1) // m) * m


# Lane-padded widths (multiples of 128) of every activation along the chain.
K0P = _round_up(C0 * P, 128)     # 750 -> 768
K1P = _round_up(C1 * P, 128)     # 375 -> 384
K2P = _round_up(C2 * P, 128)     # 175 -> 256
K3P = _round_up(C3 * P, 128)     # 125 -> 128
NPAD = 128                       # lane-padded logit width (lane-dense output)


def tree_classif_kernel(x_ref, t1_ref, b1_ref, t2_ref, b2_ref, t3_ref, b3_ref,
                        wl_ref, bl_ref, out_ref):
    # x_ref: (TB, 768) = one batch tile, channel-major flattened images.
    # Each conv layer is a single lane-dense MXU matmul against a dense
    # (Cin*25, Cout*25) weight with padding=1 folded in; bias is pre-tiled per
    # spatial position.  Padded lanes stay exactly zero through every layer
    # (zero weight cols + zero bias + ReLU), so no masking is needed.
    a = x_ref[...]
    a = jnp.maximum(
        jnp.dot(a, t1_ref[...], preferred_element_type=jnp.float32) + b1_ref[...], 0.0)
    a = jnp.maximum(
        jnp.dot(a, t2_ref[...], preferred_element_type=jnp.float32) + b2_ref[...], 0.0)
    a = jnp.maximum(
        jnp.dot(a, t3_ref[...], preferred_element_type=jnp.float32) + b3_ref[...], 0.0)
    # a is now the PyTorch flatten (c, h, w) feature vector on lanes 0..124.
    out_ref[...] = jnp.dot(a, wl_ref[...],
                           preferred_element_type=jnp.float32) + bl_ref[...]


def _conv3x3_as_dense(w_oihw):
    """Fold a padding=1 3x3 conv on a 5x5 grid into a dense matmul weight.

    w_oihw: (Cout, Cin, 3, 3) PyTorch OIHW weight.
    Returns T of shape (Cin*25, Cout*25) such that, with x flattened in NCHW
    (channel-major) order, y_flat = x_flat @ T reproduces the conv output
    flattened in the same order.  Out-of-bounds taps map to zero blocks.
    """
    Cout, Cin, KH, KW = w_oihw.shape
    # Static tap table: tap[p_in, p_out] = ky*KW + kx if (p_in, p_out) are
    # related by a valid kernel offset, else KH*KW (sentinel -> zero row).
    tap = np.full((P, P), KH * KW, dtype=np.int32)
    for oy in range(H):
        for ox in range(W):
            for ky in range(KH):
                for kx in range(KW):
                    iy, ix = oy + ky - 1, ox + kx - 1
                    if 0 <= iy < H and 0 <= ix < W:
                        tap[iy * W + ix, oy * W + ox] = ky * KW + kx
    w_k = jnp.transpose(w_oihw.reshape(Cout, Cin, KH * KW), (2, 1, 0))  # (9, Cin, Cout)
    w_k = jnp.concatenate([w_k, jnp.zeros((1, Cin, Cout), w_k.dtype)], axis=0)
    g = w_k[tap]                                    # (P_in, P_out, Cin, Cout)
    # T[(ci*P + p_in), (co*P + p_out)]
    return jnp.transpose(g, (2, 0, 3, 1)).reshape(Cin * P, Cout * P)


def _pad2d(a, rows, cols):
    return jnp.pad(a, ((0, rows - a.shape[0]), (0, cols - a.shape[1])))


def init_params(key):
    """Deterministic synthetic params, PyTorch shapes: OIHW conv, (out,in) linear."""
    ks = jax.random.split(key, 8)

    def u(k, shape, fan_in):
        bound = 1.0 / np.sqrt(fan_in)
        return jax.random.uniform(k, shape, jnp.float32, -bound, bound)

    w1 = u(ks[0], (C1, C0, 3, 3), C0 * 9); b1 = u(ks[1], (C1,), C0 * 9)
    w2 = u(ks[2], (C2, C1, 3, 3), C1 * 9); b2 = u(ks[3], (C2,), C1 * 9)
    w3 = u(ks[4], (C3, C2, 3, 3), C2 * 9); b3 = u(ks[5], (C3,), C2 * 9)
    wl = u(ks[6], (N_CLASSES, FEAT), FEAT)
    bl = u(ks[7], (N_CLASSES,), FEAT)
    return (w1, b1, w2, b2, w3, b3, wl, bl)


def tree_classif_forward(x_nchw, params, batch_tile=256):
    w1, b1, w2, b2, w3, b3, wl, bl = params
    B = x_nchw.shape[0]
    # TB: multiple of 8 (sublane alignment), clamped to the padded batch so tiny
    # test batches stay a single cheap step.  batch_tile=256 keeps per-step VMEM
    # small and, for large B, yields G >= 2 so v7x megacore actually splits work.
    TB = max(8, min(_round_up(batch_tile, 8), _round_up(B, 8)))
    G = pl.cdiv(B, TB)
    B_pad = G * TB

    # Input: NCHW -> (B, C0*H*W) channel-major flatten (matches T1's row order),
    # then pad batch rows and lanes.  Each grid step's (TB, 768) block is one
    # contiguous HBM region.
    x = x_nchw.reshape(B, C0 * P).astype(jnp.float32)
    x = jnp.pad(x, ((0, B_pad - B), (0, K0P - C0 * P)))

    # Dense per-layer weights (padding=1 folded in), lane/row padded to 128s.
    t1 = _pad2d(_conv3x3_as_dense(w1), K0P, K1P)
    t2 = _pad2d(_conv3x3_as_dense(w2), K1P, K2P)
    t3 = _pad2d(_conv3x3_as_dense(w3), K2P, K3P)
    # PyTorch flatten order (c, h, w) == the layer-3 lane order -> plain wl.T.
    wl_t = _pad2d(jnp.transpose(wl), K3P, NPAD)
    # Biases tiled per spatial position to match the (c*25 + p) lane order.
    b1v = _pad2d(jnp.repeat(b1, P)[None, :], 1, K1P)
    b2v = _pad2d(jnp.repeat(b2, P)[None, :], 1, K2P)
    b3v = _pad2d(jnp.repeat(b3, P)[None, :], 1, K3P)
    blv = _pad2d(bl[None, :], 1, NPAD)

    const = lambda a: pl.BlockSpec(a.shape, lambda g: (0, 0))

    out = pl.pallas_call(
        tree_classif_kernel,
        out_shape=jax.ShapeDtypeStruct((B_pad, NPAD), jnp.float32),
        grid=(G,),
        in_specs=[
            pl.BlockSpec((TB, K0P), lambda g: (g, 0)),
            const(t1), const(b1v),
            const(t2), const(b2v),
            const(t3), const(b3v),
            const(wl_t), const(blv),
        ],
        out_specs=pl.BlockSpec((TB, NPAD), lambda g: (g, 0)),
        compiler_params=pltpu.CompilerParams(
            dimension_semantics=("parallel",),
            vmem_limit_bytes=32 * 1024 * 1024),
    )(x, t1, b1v, t2, b2v, t3, b3v, wl_t, blv)
    return out[:B, :N_CLASSES]                                  # (B, n_classes)


def ref_forward(x_nchw, params):
    """Pure-JAX reference with PyTorch NCHW/OIHW semantics (full-precision)."""
    w1, b1, w2, b2, w3, b3, wl, bl = params
    y = x_nchw.astype(jnp.float32)
    for w, b in ((w1, b1), (w2, b2), (w3, b3)):
        y = lax.conv_general_dilated(y, w, (1, 1), 'SAME',
                                     dimension_numbers=('NCHW', 'OIHW', 'NCHW'),
                                     precision=lax.Precision.HIGHEST)
        y = jnp.maximum(y + b[None, :, None, None], 0.0)
    y = y.reshape(y.shape[0], -1)                               # (B, C*H*W)
    return jnp.dot(y, wl.T, precision=lax.Precision.HIGHEST) + bl


if __name__ == "__main__":
    key = jax.random.PRNGKey(0)
    k_x, k_p = jax.random.split(key)
    params = init_params(k_p)

    # (B=2, tile=256): single grid step with batch padding.
    # (B=33, tile=16): multi-step grid (G=3) with a remainder tile.
    for B, tb in ((2, 256), (33, 16)):
        x = jax.random.normal(jax.random.fold_in(k_x, B), (B, C0, H, W),
                              dtype=jnp.float32)                 # NCHW like PyTorch
        out = jax.block_until_ready(tree_classif_forward(x, params, batch_tile=tb))
        ref = jax.block_until_ready(ref_forward(x, params))
        assert out.shape == (B, N_CLASSES)
        np.testing.assert_allclose(np.asarray(out), np.asarray(ref),
                                   rtol=2e-4, atol=2e-4)

    print("KERNEL_OK")
</pallas_src>

<mosaic_0001>
module attributes {stable_mosaic.version = 11 : i64} {
  func.func @tree_classif_kernel(%arg0: i32, %arg1: memref<8x768xf32, #tpu.memory_space<vmem>>, %arg2: memref<768x384xf32, #tpu.memory_space<vmem>>, %arg3: memref<1x384xf32, #tpu.memory_space<vmem>>, %arg4: memref<384x256xf32, #tpu.memory_space<vmem>>, %arg5: memref<1x256xf32, #tpu.memory_space<vmem>>, %arg6: memref<256x128xf32, #tpu.memory_space<vmem>>, %arg7: memref<1x128xf32, #tpu.memory_space<vmem>>, %arg8: memref<128x128xf32, #tpu.memory_space<vmem>>, %arg9: memref<1x128xf32, #tpu.memory_space<vmem>>, %arg10: memref<8x128xf32, #tpu.memory_space<vmem>>) attributes {dimension_semantics = [#tpu.dimension_semantics<parallel>], iteration_bounds = array<i64: 1>, scalar_prefetch = 0 : i64, scratch_operands = 0 : i64, tpu.core_type = #tpu.core_type<tc>, window_params = [{transform_indices = @transform_0, window_bounds = array<i64: 8, 768>}, {pipeline_mode = #tpu.pipeline_mode<synchronous>, transform_indices = @transform_1, window_bounds = array<i64: 768, 384>}, {pipeline_mode = #tpu.pipeline_mode<synchronous>, transform_indices = @transform_2, window_bounds = array<i64: 1, 384>}, {pipeline_mode = #tpu.pipeline_mode<synchronous>, transform_indices = @transform_3, window_bounds = array<i64: 384, 256>}, {pipeline_mode = #tpu.pipeline_mode<synchronous>, transform_indices = @transform_4, window_bounds = array<i64: 1, 256>}, {pipeline_mode = #tpu.pipeline_mode<synchronous>, transform_indices = @transform_5, window_bounds = array<i64: 256, 128>}, {pipeline_mode = #tpu.pipeline_mode<synchronous>, transform_indices = @transform_6, window_bounds = array<i64: 1, 128>}, {pipeline_mode = #tpu.pipeline_mode<synchronous>, transform_indices = @transform_7, window_bounds = array<i64: 128, 128>}, {pipeline_mode = #tpu.pipeline_mode<synchronous>, transform_indices = @transform_8, window_bounds = array<i64: 1, 128>}, {transform_indices = @transform_9, window_bounds = array<i64: 8, 128>}]} {
    %c0 = arith.constant 0 : index
    %c0_0 = arith.constant 0 : index
    %0 = vector.load %arg1[%c0, %c0_0] : memref<8x768xf32, #tpu.memory_space<vmem>>, vector<8x768xf32>
    %c0_1 = arith.constant 0 : index
    %c0_2 = arith.constant 0 : index
    %1 = vector.load %arg2[%c0_1, %c0_2] : memref<768x384xf32, #tpu.memory_space<vmem>>, vector<768x384xf32>
    %cst = arith.constant dense<0.000000e+00> : vector<8x384xf32>
    %2 = tpu.matmul %0, %1, %cst {dimension_numbers = #tpu.dot_dimension_numbers<[1], [0], [0], [1], [0, 0, 1, 1], [], []>} : vector<8x768xf32>, vector<768x384xf32>, vector<8x384xf32> -> vector<8x384xf32>
    %c0_3 = arith.constant 0 : index
    %c0_4 = arith.constant 0 : index
    %3 = vector.load %arg3[%c0_3, %c0_4] : memref<1x384xf32, #tpu.memory_space<vmem>>, vector<1x384xf32>
    %4 = vector.broadcast %3 : vector<1x384xf32> to vector<8x384xf32>
    %5 = arith.addf %2, %4 : vector<8x384xf32>
    %cst_5 = arith.constant 0.000000e+00 : f32
    %6 = vector.broadcast %cst_5 : f32 to vector<8x384xf32>
    %7 = arith.maximumf %5, %6 : vector<8x384xf32>
    %c0_6 = arith.constant 0 : index
    %c0_7 = arith.constant 0 : index
    %8 = vector.load %arg4[%c0_6, %c0_7] : memref<384x256xf32, #tpu.memory_space<vmem>>, vector<384x256xf32>
    %cst_8 = arith.constant dense<0.000000e+00> : vector<8x256xf32>
    %9 = tpu.matmul %7, %8, %cst_8 {dimension_numbers = #tpu.dot_dimension_numbers<[1], [0], [0], [1], [0, 0, 1, 1], [], []>} : vector<8x384xf32>, vector<384x256xf32>, vector<8x256xf32> -> vector<8x256xf32>
    %c0_9 = arith.constant 0 : index
    %c0_10 = arith.constant 0 : index
    %10 = vector.load %arg5[%c0_9, %c0_10] : memref<1x256xf32, #tpu.memory_space<vmem>>, vector<1x256xf32>
    %11 = vector.broadcast %10 : vector<1x256xf32> to vector<8x256xf32>
    %12 = arith.addf %9, %11 : vector<8x256xf32>
    %cst_11 = arith.constant 0.000000e+00 : f32
    %13 = vector.broadcast %cst_11 : f32 to vector<8x256xf32>
    %14 = arith.maximumf %12, %13 : vector<8x256xf32>
    %c0_12 = arith.constant 0 : index
    %c0_13 = arith.constant 0 : index
    %15 = vector.load %arg6[%c0_12, %c0_13] : memref<256x128xf32, #tpu.memory_space<vmem>>, vector<256x128xf32>
    %cst_14 = arith.constant dense<0.000000e+00> : vector<8x128xf32>
    %16 = tpu.matmul %14, %15, %cst_14 {dimension_numbers = #tpu.dot_dimension_numbers<[1], [0], [0], [1], [0, 0, 1, 1], [], []>} : vector<8x256xf32>, vector<256x128xf32>, vector<8x128xf32> -> vector<8x128xf32>
    %c0_15 = arith.constant 0 : index
    %c0_16 = arith.constant 0 : index
    %17 = vector.load %arg7[%c0_15, %c0_16] : memref<1x128xf32, #tpu.memory_space<vmem>>, vector<1x128xf32>
    %18 = vector.broadcast %17 : vector<1x128xf32> to vector<8x128xf32>
    %19 = arith.addf %16, %18 : vector<8x128xf32>
    %cst_17 = arith.constant 0.000000e+00 : f32
    %20 = vector.broadcast %cst_17 : f32 to vector<8x128xf32>
    %21 = arith.maximumf %19, %20 : vector<8x128xf32>
    %c0_18 = arith.constant 0 : index
    %c0_19 = arith.constant 0 : index
    %22 = vector.load %arg8[%c0_18, %c0_19] : memref<128x128xf32, #tpu.memory_space<vmem>>, vector<128x128xf32>
    %cst_20 = arith.constant dense<0.000000e+00> : vector<8x128xf32>
    %23 = tpu.matmul %21, %22, %cst_20 {dimension_numbers = #tpu.dot_dimension_numbers<[1], [0], [0], [1], [0, 0, 1, 1], [], []>} : vector<8x128xf32>, vector<128x128xf32>, vector<8x128xf32> -> vector<8x128xf32>
    %c0_21 = arith.constant 0 : index
    %c0_22 = arith.constant 0 : index
    %24 = vector.load %arg9[%c0_21, %c0_22] : memref<1x128xf32, #tpu.memory_space<vmem>>, vector<1x128xf32>
    %25 = vector.broadcast %24 : vector<1x128xf32> to vector<8x128xf32>
    %26 = arith.addf %23, %25 : vector<8x128xf32>
    %c0_23 = arith.constant 0 : index
    %c0_24 = arith.constant 0 : index
    %27 = vector.load %arg10[%c0_23, %c0_24] : memref<8x128xf32, #tpu.memory_space<vmem>>, vector<8x128xf32>
    tpu.vector_store %arg10[%c0_23, %c0_24], %26 {strides = array<i32>} : memref<8x128xf32, #tpu.memory_space<vmem>>, vector<8x128xf32>,
    return
  }
  func.func @transform_0(%arg0: i32) -> (i32, i32) {
    %c0_i32 = arith.constant 0 : i32
    %c0_i32_0 = arith.constant 0 : i32
    return %arg0, %c0_i32 : i32, i32
  }
  func.func @transform_1(%arg0: i32) -> (i32, i32) {
    %c0_i32 = arith.constant 0 : i32
    %c0_i32_0 = arith.constant 0 : i32
    %c0_i32_1 = arith.constant 0 : i32
    return %c0_i32, %c0_i32_0 : i32, i32
  }
  func.func @transform_2(%arg0: i32) -> (i32, i32) {
    %c0_i32 = arith.constant 0 : i32
    %c0_i32_0 = arith.constant 0 : i32
    %c0_i32_1 = arith.constant 0 : i32
    return %c0_i32, %c0_i32_0 : i32, i32
  }
  func.func @transform_3(%arg0: i32) -> (i32, i32) {
    %c0_i32 = arith.constant 0 : i32
    %c0_i32_0 = arith.constant 0 : i32
    %c0_i32_1 = arith.constant 0 : i32
    return %c0_i32, %c0_i32_0 : i32, i32
  }
  func.func @transform_4(%arg0: i32) -> (i32, i32) {
    %c0_i32 = arith.constant 0 : i32
    %c0_i32_0 = arith.constant 0 : i32
    %c0_i32_1 = arith.constant 0 : i32
    return %c0_i32, %c0_i32_0 : i32, i32
  }
  func.func @transform_5(%arg0: i32) -> (i32, i32) {
    %c0_i32 = arith.constant 0 : i32
    %c0_i32_0 = arith.constant 0 : i32
    %c0_i32_1 = arith.constant 0 : i32
    return %c0_i32, %c0_i32_0 : i32, i32
  }
  func.func @transform_6(%arg0: i32) -> (i32, i32) {
    %c0_i32 = arith.constant 0 : i32
    %c0_i32_0 = arith.constant 0 : i32
    %c0_i32_1 = arith.constant 0 : i32
    return %c0_i32, %c0_i32_0 : i32, i32
  }
  func.func @transform_7(%arg0: i32) -> (i32, i32) {
    %c0_i32 = arith.constant 0 : i32
    %c0_i32_0 = arith.constant 0 : i32
    %c0_i32_1 = arith.constant 0 : i32
    return %c0_i32, %c0_i32_0 : i32, i32
  }
  func.func @transform_8(%arg0: i32) -> (i32, i32) {
    %c0_i32 = arith.constant 0 : i32
    %c0_i32_0 = arith.constant 0 : i32
    %c0_i32_1 = arith.constant 0 : i32
    return %c0_i32, %c0_i32_0 : i32, i32
  }
  func.func @transform_9(%arg0: i32) -> (i32, i32) {
    %c0_i32 = arith.constant 0 : i32
    %c0_i32_0 = arith.constant 0 : i32
    return %arg0, %c0_i32 : i32, i32
  }
}

</mosaic_0001>

<llo_original>
// kernel: tpu_custom_call.1
$region0: #{tpu_custom_call.1}
  #allocation0 [shape = 'u32[]', space=smem, size = 0x4, offset = 0x4, fixed_abs, tag = 'smem constant byte address 0x4 - core index']
  #allocation1 [shape = 'u32[144,128]{1,0:T(1,128)}', space=vmem, size = 0x12000, scoped, tag = 'internal scratch']
  %s0 = inlined_call_operand.hbm [shape: f32[8,768], index: 0, kind: input, shape index: {}]
  %s1 = inlined_call_operand.hbm [shape: f32[768,384], index: 1, kind: input, shape index: {}]
  %s2 = inlined_call_operand.hbm [shape: f32[1,384], index: 2, kind: input, shape index: {}]
  %s3 = inlined_call_operand.hbm [shape: f32[384,256], index: 3, kind: input, shape index: {}]
  %s4 = inlined_call_operand.hbm [shape: f32[1,256], index: 4, kind: input, shape index: {}]
  %s5 = inlined_call_operand.hbm [shape: f32[256,128], index: 5, kind: input, shape index: {}]
  %s6 = inlined_call_operand.hbm [shape: f32[1,128], index: 6, kind: input, shape index: {}]
  %s7 = inlined_call_operand.hbm [shape: f32[128,128], index: 7, kind: input, shape index: {}]
  %s8 = inlined_call_operand.hbm [shape: f32[1,128], index: 8, kind: input, shape index: {}]
  %s9 = inlined_call_operand.hbm [shape: f32[8,128], index: 9, kind: output, shape index: {}]
  %s10 = sld [smem:[#allocation0]]
  $region82: #{tpu_custom_call.1} parent=0
    _
  %s12 = ssub.s32 1, %s10
  %s13 = scalar_select 0, %s12, %s10
  $region1: #{tpu_custom_call.1} parent=0
    #allocation2 [shape = 'u8[24576]{0}', space=vmem, size = 0x6000, scoped, tag = 'input window, operand 0, single buffered']
    #allocation3 [shape = 's32[1]{0}', space=sflag, size = 0x4, scoped, tag = 'scoped memory for tpu_custom_call.1']
    #allocation4 [shape = 's32[1]{0}', space=sflag, size = 0x4, scoped, tag = 'scoped memory for tpu_custom_call.1']
    #allocation5 [shape = 'u8[1179648]{0}', space=vmem, size = 0x120000, scoped, tag = 'input window, operand 1, single buffered']
    #allocation6 [shape = 's32[1]{0}', space=sflag, size = 0x4, scoped, tag = 'scoped memory for tpu_custom_call.1']
    #allocation7 [shape = 'u8[1536]{0}', space=vmem, size = 0x800, scoped, tag = 'input window, operand 2, single buffered']
    #allocation8 [shape = 'u8[393216]{0}', space=vmem, size = 0x60000, scoped, tag = 'input window, operand 3, single buffered']
    #allocation9 [shape = 's32[1]{0}', space=sflag, size = 0x4, scoped, tag = 'scoped memory for tpu_custom_call.1']
    #allocation10 [shape = 'u8[1024]{0}', space=vmem, size = 0x400, scoped, tag = 'input window, operand 4, single buffered']
    #allocation11 [shape = 'u8[131072]{0}', space=vmem, size = 0x20000, scoped, tag = 'input window, operand 5, single buffered']
    #allocation12 [shape = 's32[1]{0}', space=sflag, size = 0x4, scoped, tag = 'scoped memory for tpu_custom_call.1']
    #allocation13 [shape = 'u8[512]{0}', space=vmem, size = 0x400, scoped, tag = 'input window, operand 6, single buffered']
    #allocation14 [shape = 'u8[65536]{0}', space=vmem, size = 0x10000, scoped, tag = 'input window, operand 7, single buffered']
    #allocation15 [shape = 's32[1]{0}', space=sflag, size = 0x4, scoped, tag = 'scoped memory for tpu_custom_call.1']
    #allocation16 [shape = 'u8[512]{0}', space=vmem, size = 0x400, scoped, tag = 'input window, operand 8, single buffered']
    #allocation17 [shape = 'u8[4096]{0}', space=vmem, size = 0x1000, scoped, tag = 'output window, operand 0, single buffered']
    %14 = vsyncpa [#allocation3], 0
    %15 = vsyncpa [#allocation6], 0
    %16 = vsyncpa [#allocation9], 0
    %17 = vsyncpa [#allocation12], 0
    %18 = vsyncpa [#allocation15], 0
    %19 = vsyncpa [#allocation4], 0
    // Predicated region
    $region2: #{tpu_custom_call.1} parent=1 // pred_check
      _
    $region3: #{tpu_custom_call.1} parent=1 // pred_check_branch
      %21 = sbr.rel (0) target = $region5
    $region4: #{tpu_custom_call.1} parent=1 // pred_region
      %s23 = ssub.s32 768, 768
      %24 = vsyncadd [#allocation3], %s23
      %s26 = sshll.u32 [#allocation2], 4
      %s27 = int_to_ptr.vmem [resolvable:$true] %s26
      %29 = dma.hbm_to_vmem [thread:$0]  %s0, 768, %s27, [#allocation3]
    $region5: #{tpu_custom_call.1} parent=1 // pred_fallthru
      _
    // Predicated region
    $region6: #{tpu_custom_call.1} parent=1 // pred_check
      _
    $region7: #{tpu_custom_call.1} parent=1 // pred_check_branch
      %31 = sbr.rel (0) target = $region9
    $region8: #{tpu_custom_call.1} parent=1 // pred_region
      %s33 = ssub.s32 36864, 36864
      %34 = vsyncadd [#allocation6], %s33
      %s35 = sshll.u32 [#allocation5], 4
      %s36 = int_to_ptr.vmem [resolvable:$true] %s35
      %41 = dma.hbm_to_vmem [thread:$0]  %s1, 36864, %s36, [#allocation6], 384, 384, 24
    $region9: #{tpu_custom_call.1} parent=1 // pred_fallthru
      _
    // Predicated region
    $region10: #{tpu_custom_call.1} parent=1 // pred_check
      _
    $region11: #{tpu_custom_call.1} parent=1 // pred_check_branch
      %43 = sbr.rel (0) target = $region13
    $region12: #{tpu_custom_call.1} parent=1 // pred_region
      %s45 = ssub.s32 48, 48
      %46 = vsyncadd [#allocation6], %s45
      %s48 = sshll.u32 [#allocation7], 4
      %s49 = int_to_ptr.vmem [resolvable:$true] %s48
      %51 = dma.hbm_to_vmem [thread:$0]  %s2, 48, %s49, [#allocation6]
    $region13: #{tpu_custom_call.1} parent=1 // pred_fallthru
      _
    // Predicated region
    $region14: #{tpu_custom_call.1} parent=1 // pred_check
      _
    $region15: #{tpu_custom_call.1} parent=1 // pred_check_branch
      %53 = sbr.rel (0) target = $region17
    $region16: #{tpu_custom_call.1} parent=1 // pred_region
      %s55 = ssub.s32 12288, 12288
      %56 = vsyncadd [#allocation9], %s55
      %s57 = sshll.u32 [#allocation8], 4
      %s58 = int_to_ptr.vmem [resolvable:$true] %s57
      %63 = dma.hbm_to_vmem [thread:$0]  %s3, 12288, %s58, [#allocation9], 256, 256, 16
    $region17: #{tpu_custom_call.1} parent=1 // pred_fallthru
      _
    // Predicated region
    $region18: #{tpu_custom_call.1} parent=1 // pred_check
      _
    $region19: #{tpu_custom_call.1} parent=1 // pred_check_branch
      %65 = sbr.rel (0) target = $region21
    $region20: #{tpu_custom_call.1} parent=1 // pred_region
      %s67 = ssub.s32 32, 32
      %68 = vsyncadd [#allocation9], %s67
      %s70 = sshll.u32 [#allocation10], 4
      %s71 = int_to_ptr.vmem [resolvable:$true] %s70
      %73 = dma.hbm_to_vmem [thread:$0]  %s4, 32, %s71, [#allocation9]
    $region21: #{tpu_custom_call.1} parent=1 // pred_fallthru
      _
    // Predicated region
    $region22: #{tpu_custom_call.1} parent=1 // pred_check
      _
    $region23: #{tpu_custom_call.1} parent=1 // pred_check_branch
      %75 = sbr.rel (0) target = $region25
    $region24: #{tpu_custom_call.1} parent=1 // pred_region
      %s77 = ssub.s32 4096, 4096
      %78 = vsyncadd [#allocation12], %s77
      %s79 = sshll.u32 [#allocation11], 4
      %s80 = int_to_ptr.vmem [resolvable:$true] %s79
      %85 = dma.hbm_to_vmem [thread:$0]  %s5, 4096, %s80, [#allocation12], 128, 128, 8
    $region25: #{tpu_custom_call.1} parent=1 // pred_fallthru
      _
    // Predicated region
    $region26: #{tpu_custom_call.1} parent=1 // pred_check
      _
    $region27: #{tpu_custom_call.1} parent=1 // pred_check_branch
      %87 = sbr.rel (0) target = $region29
    $region28: #{tpu_custom_call.1} parent=1 // pred_region
      %s89 = ssub.s32 16, 16
      %90 = vsyncadd [#allocation12], %s89
      %s92 = sshll.u32 [#allocation13], 4
      %s93 = int_to_ptr.vmem [resolvable:$true] %s92
      %95 = dma.hbm_to_vmem [thread:$0]  %s6, 16, %s93, [#allocation12]
    $region29: #{tpu_custom_call.1} parent=1 // pred_fallthru
      _
    // Predicated region
    $region30: #{tpu_custom_call.1} parent=1 // pred_check
      _
    $region31: #{tpu_custom_call.1} parent=1 // pred_check_branch
      %97 = sbr.rel (0) target = $region33
    $region32: #{tpu_custom_call.1} parent=1 // pred_region
      %s99 = ssub.s32 2048, 2048
      %100 = vsyncadd [#allocation15], %s99
      %s101 = sshll.u32 [#allocation14], 4
      %s102 = int_to_ptr.vmem [resolvable:$true] %s101
      %107 = dma.hbm_to_vmem [thread:$0]  %s7, 2048, %s102, [#allocation15], 128, 128, 8
    $region33: #{tpu_custom_call.1} parent=1 // pred_fallthru
      _
    // Predicated region
    $region34: #{tpu_custom_call.1} parent=1 // pred_check
      _
    $region35: #{tpu_custom_call.1} parent=1 // pred_check_branch
      %109 = sbr.rel (0) target = $region37
    $region36: #{tpu_custom_call.1} parent=1 // pred_region
      %s111 = ssub.s32 16, 16
      %112 = vsyncadd [#allocation15], %s111
      %s114 = sshll.u32 [#allocation16], 4
      %s115 = int_to_ptr.vmem [resolvable:$true] %s114
      %117 = dma.hbm_to_vmem [thread:$0]  %s8, 16, %s115, [#allocation15]
    $region37: #{tpu_custom_call.1} parent=1 // pred_fallthru
      _
    // Predicated region
    $region38: #{tpu_custom_call.1} parent=1 // pred_check
      _
    $region39: #{tpu_custom_call.1} parent=1 // pred_check_branch
      %119 = sbr.rel (0) target = $region41
    $region40: #{tpu_custom_call.1} parent=1 // pred_region
      %120 = dma.done [#allocation3], 768
    $region41: #{tpu_custom_call.1} parent=1 // pred_fallthru
      _
    // Predicated region
    $region42: #{tpu_custom_call.1} parent=1 // pred_check
      _
    $region43: #{tpu_custom_call.1} parent=1 // pred_check_branch
      %122 = sbr.rel (0) target = $region45
    $region44: #{tpu_custom_call.1} parent=1 // pred_region
      %123 = dma.done [#allocation6], 36864
    $region45: #{tpu_custom_call.1} parent=1 // pred_fallthru
      _
    // Predicated region
    $region46: #{tpu_custom_call.1} parent=1 // pred_check
      _
    $region47: #{tpu_custom_call.1} parent=1 // pred_check_branch
      %125 = sbr.rel (0) target = $region49
    $region48: #{tpu_custom_call.1} parent=1 // pred_region
      %126 = dma.done [#allocation6], 48
    $region49: #{tpu_custom_call.1} parent=1 // pred_fallthru
      _
    // Predicated region
    $region50: #{tpu_custom_call.1} parent=1 // pred_check
      _
    $region51: #{tpu_custom_call.1} parent=1 // pred_check_branch
      %128 = sbr.rel (0) target = $region53
    $region52: #{tpu_custom_call.1} parent=1 // pred_region
      %129 = dma.done [#allocation9], 12288
    $region53: #{tpu_custom_call.1} parent=1 // pred_fallthru
      _
    // Predicated region
    $region54: #{tpu_custom_call.1} parent=1 // pred_check
      _
    $region55: #{tpu_custom_call.1} parent=1 // pred_check_branch
      %131 = sbr.rel (0) target = $region57
    $region56: #{tpu_custom_call.1} parent=1 // pred_region
      %132 = dma.done [#allocation9], 32
    $region57: #{tpu_custom_call.1} parent=1 // pred_fallthru
      _
    // Predicated region
    $region58: #{tpu_custom_call.1} parent=1 // pred_check
      _
    $region59: #{tpu_custom_call.1} parent=1 // pred_check_branch
      %134 = sbr.rel (0) target = $region61
    $region60: #{tpu_custom_call.1} parent=1 // pred_region
      %135 = dma.done [#allocation12], 4096
    $region61: #{tpu_custom_call.1} parent=1 // pred_fallthru
      _
    // Predicated region
    $region62: #{tpu_custom_call.1} parent=1 // pred_check
      _
    $region63: #{tpu_custom_call.1} parent=1 // pred_check_branch
      %137 = sbr.rel (0) target = $region65
    $region64: #{tpu_custom_call.1} parent=1 // pred_region
      %138 = dma.done [#allocation12], 16
    $region65: #{tpu_custom_call.1} parent=1 // pred_fallthru
      _
    // Predicated region
    $region66: #{tpu_custom_call.1} parent=1 // pred_check
      _
    $region67: #{tpu_custom_call.1} parent=1 // pred_check_branch
      %140 = sbr.rel (0) target = $region69
    $region68: #{tpu_custom_call.1} parent=1 // pred_region
      %141 = dma.done [#allocation15], 2048
    $region69: #{tpu_custom_call.1} parent=1 // pred_fallthru
      _
    // Predicated region
    $region70: #{tpu_custom_call.1} parent=1 // pred_check
      _
    $region71: #{tpu_custom_call.1} parent=1 // pred_check_branch
      %143 = sbr.rel (0) target = $region73
    $region72: #{tpu_custom_call.1} parent=1 // pred_region
      %144 = dma.done [#allocation15], 16
    $region73: #{tpu_custom_call.1} parent=1 // pred_fallthru
      _
    %v145 = vld [vmem:[#allocation2] sm:$0xff]
    %v146 = vld [vmem:[#allocation2 + $0x8] sm:$0xff]
    %v147 = vld [vmem:[#allocation2 + $0x10] sm:$0xff]
    %v148 = vld [vmem:[#allocation2 + $0x18] sm:$0xff]
    %v149 = vld [vmem:[#allocation2 + $0x20] sm:$0xff]
    %v150 = vld [vmem:[#allocation2 + $0x28] sm:$0xff]
    %v151 = vld [vmem:[#allocation5] sm:$0xff]
    %v152 = vld [vmem:[#allocation5 + $0x8] sm:$0xff]
    %v153 = vld [vmem:[#allocation5 + $0x10] sm:$0xff]
    %v154 = vld [vmem:[#allocation5 + $0x18] sm:$0xff]
    %v155 = vld [vmem:[#allocation5 + $0x20] sm:$0xff]
    %v156 = vld [vmem:[#allocation5 + $0x28] sm:$0xff]
    %v157 = vld [vmem:[#allocation5 + $0x30] sm:$0xff]
    %v158 = vld [vmem:[#allocation5 + $0x38] sm:$0xff]
    %v159 = vld [vmem:[#allocation5 + $0x40] sm:$0xff]
    %v160 = vld [vmem:[#allocation5 + $0x48] sm:$0xff]
    %v161 = vld [vmem:[#allocation5 + $0x50] sm:$0xff]
    %v162 = vld [vmem:[#allocation5 + $0x58] sm:$0xff]
    %v163 = vld [vmem:[#allocation5 + $0x60] sm:$0xff]
    %v164 = vld [vmem:[#allocation5 + $0x68] sm:$0xff]
    %v165 = vld [vmem:[#allocation5 + $0x70] sm:$0xff]
    %v166 = vld [vmem:[#allocation5 + $0x78] sm:$0xff]
    %v167 = vld [vmem:[#allocation5 + $0x80] sm:$0xff]
    %v168 = vld [vmem:[#allocation5 + $0x88] sm:$0xff]
    %v169 = vld [vmem:[#allocation5 + $0x90] sm:$0xff]
    %v170 = vld [vmem:[#allocation5 + $0x98] sm:$0xff]
    %v171 = vld [vmem:[#allocation5 + $0xa0] sm:$0xff]
    %v172 = vld [vmem:[#allocation5 + $0xa8] sm:$0xff]
    %v173 = vld [vmem:[#allocation5 + $0xb0] sm:$0xff]
    %v174 = vld [vmem:[#allocation5 + $0xb8] sm:$0xff]
    %v175 = vld [vmem:[#allocation5 + $0xc0] sm:$0xff]
    %v176 = vld [vmem:[#allocation5 + $0xc8] sm:$0xff]
    %v177 = vld [vmem:[#allocation5 + $0xd0] sm:$0xff]
    %v178 = vld [vmem:[#allocation5 + $0xd8] sm:$0xff]
    %v179 = vld [vmem:[#allocation5 + $0xe0] sm:$0xff]
    %v180 = vld [vmem:[#allocation5 + $0xe8] sm:$0xff]
    %v181 = vld [vmem:[#allocation5 + $0xf0] sm:$0xff]
    %v182 = vld [vmem:[#allocation5 + $0xf8] sm:$0xff]
    %v183 = vld [vmem:[#allocation5 + $0x100] sm:$0xff]
    %v184 = vld [vmem:[#allocation5 + $0x108] sm:$0xff]
    %v185 = vld [vmem:[#allocation5 + $0x110] sm:$0xff]
    %v186 = vld [vmem:[#allocation5 + $0x118] sm:$0xff]
    %v187 = vld [vmem:[#allocation5 + $0x120] sm:$0xff]
    %v188 = vld [vmem:[#allocation5 + $0x128] sm:$0xff]
    %v189 = vld [vmem:[#allocation5 + $0x130] sm:$0xff]
    %v190 = vld [vmem:[#allocation5 + $0x138] sm:$0xff]
    %v191 = vld [vmem:[#allocation5 + $0x140] sm:$0xff]
    %v192 = vld [vmem:[#allocation5 + $0x148] sm:$0xff]
    %v193 = vld [vmem:[#allocation5 + $0x150] sm:$0xff]
    %v194 = vld [vmem:[#allocation5 + $0x158] sm:$0xff]
    %v195 = vld [vmem:[#allocation5 + $0x160] sm:$0xff]
    %v196 = vld [vmem:[#allocation5 + $0x168] sm:$0xff]
    %v197 = vld [vmem:[#allocation5 + $0x170] sm:$0xff]
    %v198 = vld [vmem:[#allocation5 + $0x178] sm:$0xff]
    %v199 = vld [vmem:[#allocation5 + $0x180] sm:$0xff]
    %v200 = vld [vmem:[#allocation5 + $0x188] sm:$0xff]
    %v201 = vld [vmem:[#allocation5 + $0x190] sm:$0xff]
    %v202 = vld [vmem:[#allocation5 + $0x198] sm:$0xff]
    %v203 = vld [vmem:[#allocation5 + $0x1a0] sm:$0xff]
    %v204 = vld [vmem:[#allocation5 + $0x1a8] sm:$0xff]
    %v205 = vld [vmem:[#allocation5 + $0x1b0] sm:$0xff]
    %v206 = vld [vmem:[#allocation5 + $0x1b8] sm:$0xff]
    %v207 = vld [vmem:[#allocation5 + $0x1c0] sm:$0xff]
    %v208 = vld [vmem:[#allocation5 + $0x1c8] sm:$0xff]
    %v209 = vld [vmem:[#allocation5 + $0x1d0] sm:$0xff]
    %v210 = vld [vmem:[#allocation5 + $0x1d8] sm:$0xff]
    %v211 = vld [vmem:[#allocation5 + $0x1e0] sm:$0xff]
    %v212 = vld [vmem:[#allocation5 + $0x1e8] sm:$0xff]
    %v213 = vld [vmem:[#allocation5 + $0x1f0] sm:$0xff]
    %v214 = vld [vmem:[#allocation5 + $0x1f8] sm:$0xff]
    %v215 = vld [vmem:[#allocation5 + $0x200] sm:$0xff]
    %v216 = vld [vmem:[#allocation5 + $0x208] sm:$0xff]
    %v217 = vld [vmem:[#allocation5 + $0x210] sm:$0xff]
    %v218 = vld [vmem:[#allocation5 + $0x218] sm:$0xff]
    %v219 = vld [vmem:[#allocation5 + $0x220] sm:$0xff]
    %v220 = vld [vmem:[#allocation5 + $0x228] sm:$0xff]
    %v221 = vld [vmem:[#allocation5 + $0x230] sm:$0xff]
    %v222 = vld [vmem:[#allocation5 + $0x238] sm:$0xff]
    %v223 = vld [vmem:[#allocation5 + $0x240] sm:$0xff]
    %v224 = vld [vmem:[#allocation5 + $0x248] sm:$0xff]
    %v225 = vld [vmem:[#allocation5 + $0x250] sm:$0xff]
    %v226 = vld [vmem:[#allocation5 + $0x258] sm:$0xff]
    %v227 = vld [vmem:[#allocation5 + $0x260] sm:$0xff]
    %v228 = vld [vmem:[#allocation5 + $0x268] sm:$0xff]
    %v229 = vld [vmem:[#allocation5 + $0x270] sm:$0xff]
    %v230 = vld [vmem:[#allocation5 + $0x278] sm:$0xff]
    %v231 = vld [vmem:[#allocation5 + $0x280] sm:$0xff]
    %v232 = vld [vmem:[#allocation5 + $0x288] sm:$0xff]
    %v233 = vld [vmem:[#allocation5 + $0x290] sm:$0xff]
    %v234 = vld [vmem:[#allocation5 + $0x298] sm:$0xff]
    %v235 = vld [vmem:[#allocation5 + $0x2a0] sm:$0xff]
    %v236 = vld [vmem:[#allocation5 + $0x2a8] sm:$0xff]
    %v237 = vld [vmem:[#allocation5 + $0x2b0] sm:$0xff]
    %v238 = vld [vmem:[#allocation5 + $0x2b8] sm:$0xff]
    %v239 = vld [vmem:[#allocation5 + $0x2c0] sm:$0xff]
    %v240 = vld [vmem:[#allocation5 + $0x2c8] sm:$0xff]
    %v241 = vld [vmem:[#allocation5 + $0x2d0] sm:$0xff]
    %v242 = vld [vmem:[#allocation5 + $0x2d8] sm:$0xff]
    %v243 = vld [vmem:[#allocation5 + $0x2e0] sm:$0xff]
    %v244 = vld [vmem:[#allocation5 + $0x2e8] sm:$0xff]
    %v245 = vld [vmem:[#allocation5 + $0x2f0] sm:$0xff]
    %v246 = vld [vmem:[#allocation5 + $0x2f8] sm:$0xff]
    %v247 = vld [vmem:[#allocation5 + $0x300] sm:$0xff]
    %v248 = vld [vmem:[#allocation5 + $0x308] sm:$0xff]
    %v249 = vld [vmem:[#allocation5 + $0x310] sm:$0xff]
    %v250 = vld [vmem:[#allocation5 + $0x318] sm:$0xff]
    %v251 = vld [vmem:[#allocation5 + $0x320] sm:$0xff]
    %v252 = vld [vmem:[#allocation5 + $0x328] sm:$0xff]
    %v253 = vld [vmem:[#allocation5 + $0x330] sm:$0xff]
    %v254 = vld [vmem:[#allocation5 + $0x338] sm:$0xff]
    %v255 = vld [vmem:[#allocation5 + $0x340] sm:$0xff]
    %v256 = vld [vmem:[#allocation5 + $0x348] sm:$0xff]
    %v257 = vld [vmem:[#allocation5 + $0x350] sm:$0xff]
    %v258 = vld [vmem:[#allocation5 + $0x358] sm:$0xff]
    %v259 = vld [vmem:[#allocation5 + $0x360] sm:$0xff]
    %v260 = vld [vmem:[#allocation5 + $0x368] sm:$0xff]
    %v261 = vld [vmem:[#allocation5 + $0x370] sm:$0xff]
    %v262 = vld [vmem:[#allocation5 + $0x378] sm:$0xff]
    %v263 = vld [vmem:[#allocation5 + $0x380] sm:$0xff]
    %v264 = vld [vmem:[#allocation5 + $0x388] sm:$0xff]
    %v265 = vld [vmem:[#allocation5 + $0x390] sm:$0xff]
    %v266 = vld [vmem:[#allocation5 + $0x398] sm:$0xff]
    %v267 = vld [vmem:[#allocation5 + $0x3a0] sm:$0xff]
    %v268 = vld [vmem:[#allocation5 + $0x3a8] sm:$0xff]
    %v269 = vld [vmem:[#allocation5 + $0x3b0] sm:$0xff]
    %v270 = vld [vmem:[#allocation5 + $0x3b8] sm:$0xff]
    %v271 = vld [vmem:[#allocation5 + $0x3c0] sm:$0xff]
    %v272 = vld [vmem:[#allocation5 + $0x3c8] sm:$0xff]
    %v273 = vld [vmem:[#allocation5 + $0x3d0] sm:$0xff]
    %v274 = vld [vmem:[#allocation5 + $0x3d8] sm:$0xff]
    %v275 = vld [vmem:[#allocation5 + $0x3e0] sm:$0xff]
    %v276 = vld [vmem:[#allocation5 + $0x3e8] sm:$0xff]
    %v277 = vld [vmem:[#allocation5 + $0x3f0] sm:$0xff]
    %v278 = vld [vmem:[#allocation5 + $0x3f8] sm:$0xff]
    %v279 = vld [vmem:[#allocation5 + $0x400] sm:$0xff]
    %v280 = vld [vmem:[#allocation5 + $0x408] sm:$0xff]
    %v281 = vld [vmem:[#allocation5 + $0x410] sm:$0xff]
    %v282 = vld [vmem:[#allocation5 + $0x418] sm:$0xff]
    %v283 = vld [vmem:[#allocation5 + $0x420] sm:$0xff]
    %v284 = vld [vmem:[#allocation5 + $0x428] sm:$0xff]
    %v285 = vld [vmem:[#allocation5 + $0x430] sm:$0xff]
    %v286 = vld [vmem:[#allocation5 + $0x438] sm:$0xff]
    %v287 = vld [vmem:[#allocation5 + $0x440] sm:$0xff]
    %v288 = vld [vmem:[#allocation5 + $0x448] sm:$0xff]
    %v289 = vld [vmem:[#allocation5 + $0x450] sm:$0xff]
    %v290 = vld [vmem:[#allocation5 + $0x458] sm:$0xff]
    %v291 = vld [vmem:[#allocation5 + $0x460] sm:$0xff]
    %v292 = vld [vmem:[#allocation5 + $0x468] sm:$0xff]
    %v293 = vld [vmem:[#allocation5 + $0x470] sm:$0xff]
    %v294 = vld [vmem:[#allocation5 + $0x478] sm:$0xff]
    %v295 = vld [vmem:[#allocation5 + $0x480] sm:$0xff]
    %v296 = vld [vmem:[#allocation5 + $0x488] sm:$0xff]
    %v297 = vld [vmem:[#allocation5 + $0x490] sm:$0xff]
    %v298 = vld [vmem:[#allocation5 + $0x498] sm:$0xff]
    %v299 = vld [vmem:[#allocation5 + $0x4a0] sm:$0xff]
    %v300 = vld [vmem:[#allocation5 + $0x4a8] sm:$0xff]
    %v301 = vld [vmem:[#allocation5 + $0x4b0] sm:$0xff]
    %v302 = vld [vmem:[#allocation5 + $0x4b8] sm:$0xff]
    %v303 = vld [vmem:[#allocation5 + $0x4c0] sm:$0xff]
    %v304 = vld [vmem:[#allocation5 + $0x4c8] sm:$0xff]
    %v305 = vld [vmem:[#allocation5 + $0x4d0] sm:$0xff]
    %v306 = vld [vmem:[#allocation5 + $0x4d8] sm:$0xff]
    %v307 = vld [vmem:[#allocation5 + $0x4e0] sm:$0xff]
    %v308 = vld [vmem:[#allocation5 + $0x4e8] sm:$0xff]
    %v309 = vld [vmem:[#allocation5 + $0x4f0] sm:$0xff]
    %v310 = vld [vmem:[#allocation5 + $0x4f8] sm:$0xff]
    %v311 = vld [vmem:[#allocation5 + $0x500] sm:$0xff]
    %v312 = vld [vmem:[#allocation5 + $0x508] sm:$0xff]
    %v313 = vld [vmem:[#allocation5 + $0x510] sm:$0xff]
    %v314 = vld [vmem:[#allocation5 + $0x518] sm:$0xff]
    %v315 = vld [vmem:[#allocation5 + $0x520] sm:$0xff]
    %v316 = vld [vmem:[#allocation5 + $0x528] sm:$0xff]
    %v317 = vld [vmem:[#allocation5 + $0x530] sm:$0xff]
    %v318 = vld [vmem:[#allocation5 + $0x538] sm:$0xff]
    %v319 = vld [vmem:[#allocation5 + $0x540] sm:$0xff]
    %v320 = vld [vmem:[#allocation5 + $0x548] sm:$0xff]
    %v321 = vld [vmem:[#allocation5 + $0x550] sm:$0xff]
    %v322 = vld [vmem:[#allocation5 + $0x558] sm:$0xff]
    %v323 = vld [vmem:[#allocation5 + $0x560] sm:$0xff]
    %v324 = vld [vmem:[#allocation5 + $0x568] sm:$0xff]
    %v325 = vld [vmem:[#allocation5 + $0x570] sm:$0xff]
    %v326 = vld [vmem:[#allocation5 + $0x578] sm:$0xff]
    %v327 = vld [vmem:[#allocation5 + $0x580] sm:$0xff]
    %v328 = vld [vmem:[#allocation5 + $0x588] sm:$0xff]
    %v329 = vld [vmem:[#allocation5 + $0x590] sm:$0xff]
    %v330 = vld [vmem:[#allocation5 + $0x598] sm:$0xff]
    %v331 = vld [vmem:[#allocation5 + $0x5a0] sm:$0xff]
    %v332 = vld [vmem:[#allocation5 + $0x5a8] sm:$0xff]
    %v333 = vld [vmem:[#allocation5 + $0x5b0] sm:$0xff]
    %v334 = vld [vmem:[#allocation5 + $0x5b8] sm:$0xff]
    %v335 = vld [vmem:[#allocation5 + $0x5c0] sm:$0xff]
    %v336 = vld [vmem:[#allocation5 + $0x5c8] sm:$0xff]
    %v337 = vld [vmem:[#allocation5 + $0x5d0] sm:$0xff]
    %v338 = vld [vmem:[#allocation5 + $0x5d8] sm:$0xff]
    %v339 = vld [vmem:[#allocation5 + $0x5e0] sm:$0xff]
    %v340 = vld [vmem:[#allocation5 + $0x5e8] sm:$0xff]
    %v341 = vld [vmem:[#allocation5 + $0x5f0] sm:$0xff]
    %v342 = vld [vmem:[#allocation5 + $0x5f8] sm:$0xff]
    %v343 = vld [vmem:[#allocation5 + $0x600] sm:$0xff]
    %v344 = vld [vmem:[#allocation5 + $0x608] sm:$0xff]
    %v345 = vld [vmem:[#allocation5 + $0x610] sm:$0xff]
    %v346 = vld [vmem:[#allocation5 + $0x618] sm:$0xff]
    %v347 = vld [vmem:[#allocation5 + $0x620] sm:$0xff]
    %v348 = vld [vmem:[#allocation5 + $0x628] sm:$0xff]
    %v349 = vld [vmem:[#allocation5 + $0x630] sm:$0xff]
    %v350 = vld [vmem:[#allocation5 + $0x638] sm:$0xff]
    %v351 = vld [vmem:[#allocation5 + $0x640] sm:$0xff]
    %v352 = vld [vmem:[#allocation5 + $0x648] sm:$0xff]
    %v353 = vld [vmem:[#allocation5 + $0x650] sm:$0xff]
    %v354 = vld [vmem:[#allocation5 + $0x658] sm:$0xff]
    %v355 = vld [vmem:[#allocation5 + $0x660] sm:$0xff]
    %v356 = vld [vmem:[#allocation5 + $0x668] sm:$0xff]
    %v357 = vld [vmem:[#allocation5 + $0x670] sm:$0xff]
    %v358 = vld [vmem:[#allocation5 + $0x678] sm:$0xff]
    %v359 = vld [vmem:[#allocation5 + $0x680] sm:$0xff]
    %v360 = vld [vmem:[#allocation5 + $0x688] sm:$0xff]
    %v361 = vld [vmem:[#allocation5 + $0x690] sm:$0xff]
    %v362 = vld [vmem:[#allocation5 + $0x698] sm:$0xff]
    %v363 = vld [vmem:[#allocation5 + $0x6a0] sm:$0xff]
    %v364 = vld [vmem:[#allocation5 + $0x6a8] sm:$0xff]
    %v365 = vld [vmem:[#allocation5 + $0x6b0] sm:$0xff]
    %v366 = vld [vmem:[#allocation5 + $0x6b8] sm:$0xff]
    %v367 = vld [vmem:[#allocation5 + $0x6c0] sm:$0xff]
    %v368 = vld [vmem:[#allocation5 + $0x6c8] sm:$0xff]
    %v369 = vld [vmem:[#allocation5 + $0x6d0] sm:$0xff]
    %v370 = vld [vmem:[#allocation5 + $0x6d8] sm:$0xff]
    %v371 = vld [vmem:[#allocation5 + $0x6e0] sm:$0xff]
    %v372 = vld [vmem:[#allocation5 + $0x6e8] sm:$0xff]
    %v373 = vld [vmem:[#allocation5 + $0x6f0] sm:$0xff]
    %v374 = vld [vmem:[#allocation5 + $0x6f8] sm:$0xff]
    %v375 = vld [vmem:[#allocation5 + $0x700] sm:$0xff]
    %v376 = vld [vmem:[#allocation5 + $0x708] sm:$0xff]
    %v377 = vld [vmem:[#allocation5 + $0x710] sm:$0xff]
    %v378 = vld [vmem:[#allocation5 + $0x718] sm:$0xff]
    %v379 = vld [vmem:[#allocation5 + $0x720] sm:$0xff]
    %v380 = vld [vmem:[#allocation5 + $0x728] sm:$0xff]
    %v381 = vld [vmem:[#allocation5 + $0x730] sm:$0xff]
    %v382 = vld [vmem:[#allocation5 + $0x738] sm:$0xff]
    %v383 = vld [vmem:[#allocation5 + $0x740] sm:$0xff]
    %v384 = vld [vmem:[#allocation5 + $0x748] sm:$0xff]
    %v385 = vld [vmem:[#allocation5 + $0x750] sm:$0xff]
    %v386 = vld [vmem:[#allocation5 + $0x758] sm:$0xff]
    %v387 = vld [vmem:[#allocation5 + $0x760] sm:$0xff]
    %v388 = vld [vmem:[#allocation5 + $0x768] sm:$0xff]
    %v389 = vld [vmem:[#allocation5 + $0x770] sm:$0xff]
    %v390 = vld [vmem:[#allocation5 + $0x778] sm:$0xff]
    %v391 = vld [vmem:[#allocation5 + $0x780] sm:$0xff]
    %v392 = vld [vmem:[#allocation5 + $0x788] sm:$0xff]
    %v393 = vld [vmem:[#allocation5 + $0x790] sm:$0xff]
    %v394 = vld [vmem:[#allocation5 + $0x798] sm:$0xff]
    %v395 = vld [vmem:[#allocation5 + $0x7a0] sm:$0xff]
    %v396 = vld [vmem:[#allocation5 + $0x7a8] sm:$0xff]
    %v397 = vld [vmem:[#allocation5 + $0x7b0] sm:$0xff]
    %v398 = vld [vmem:[#allocation5 + $0x7b8] sm:$0xff]
    %v399 = vld [vmem:[#allocation5 + $0x7c0] sm:$0xff]
    %v400 = vld [vmem:[#allocation5 + $0x7c8] sm:$0xff]
    %v401 = vld [vmem:[#allocation5 + $0x7d0] sm:$0xff]
    %v402 = vld [vmem:[#allocation5 + $0x7d8] sm:$0xff]
    %v403 = vld [vmem:[#allocation5 + $0x7e0] sm:$0xff]
    %v404 = vld [vmem:[#allocation5 + $0x7e8] sm:$0xff]
    %v405 = vld [vmem:[#allocation5 + $0x7f0] sm:$0xff]
    %v406 = vld [vmem:[#allocation5 + $0x7f8] sm:$0xff]
    %v407 = vld [vmem:[#allocation5 + $0x800] sm:$0xff]
    %v408 = vld [vmem:[#allocation5 + $0x808] sm:$0xff]
    %v409 = vld [vmem:[#allocation5 + $0x810] sm:$0xff]
    %v410 = vld [vmem:[#allocation5 + $0x818] sm:$0xff]
    %v411 = vld [vmem:[#allocation5 + $0x820] sm:$0xff]
    %v412 = vld [vmem:[#allocation5 + $0x828] sm:$0xff]
    %v413 = vld [vmem:[#allocation5 + $0x830] sm:$0xff]
    %v414 = vld [vmem:[#allocation5 + $0x838] sm:$0xff]
    %v415 = vld [vmem:[#allocation5 + $0x840] sm:$0xff]
    %v416 = vld [vmem:[#allocation5 + $0x848] sm:$0xff]
    %v417 = vld [vmem:[#allocation5 + $0x850] sm:$0xff]
    %v418 = vld [vmem:[#allocation5 + $0x858] sm:$0xff]
    %v419 = vld [vmem:[#allocation5 + $0x860] sm:$0xff]
    %v420 = vld [vmem:[#allocation5 + $0x868] sm:$0xff]
    %v421 = vld [vmem:[#allocation5 + $0x870] sm:$0xff]
    %v422 = vld [vmem:[#allocation5 + $0x878] sm:$0xff]
    %v423 = vld [vmem:[#allocation5 + $0x880] sm:$0xff]
    %v424 = vld [vmem:[#allocation5 + $0x888] sm:$0xff]
    %v425 = vld [vmem:[#allocation5 + $0x890] sm:$0xff]
    %v426 = vld [vmem:[#allocation5 + $0x898] sm:$0xff]
    %v427 = vld [vmem:[#allocation5 + $0x8a0] sm:$0xff]
    %v428 = vld [vmem:[#allocation5 + $0x8a8] sm:$0xff]
    %v429 = vld [vmem:[#allocation5 + $0x8b0] sm:$0xff]
    %v430 = vld [vmem:[#allocation5 + $0x8b8] sm:$0xff]
    %v431 = vld [vmem:[#allocation5 + $0x8c0] sm:$0xff]
    %v432 = vld [vmem:[#allocation5 + $0x8c8] sm:$0xff]
    %v433 = vld [vmem:[#allocation5 + $0x8d0] sm:$0xff]
    %v434 = vld [vmem:[#allocation5 + $0x8d8] sm:$0xff]
    %v435 = vld [vmem:[#allocation5 + $0x8e0] sm:$0xff]
    %v436 = vld [vmem:[#allocation5 + $0x8e8] sm:$0xff]
    %v437 = vld [vmem:[#allocation5 + $0x8f0] sm:$0xff]
    %v438 = vld [vmem:[#allocation5 + $0x8f8] sm:$0xff]
    %v439 = vld [vmem:[#allocation7] sm:$0x7]
    %v441 = vlaneseq
    %v442 = vshrl.u32 %v441, 7
    %v443 = vsub.s32 0, %v442
    %v444 = vrot.slane %v439, %v443
    %v445 = vlaneseq
    %v446 = vshrl.u32 %v445, 7
    %v447 = vsub.s32 1, %v446
    %v448 = vrot.slane %v439, %v447
    %v449 = vlaneseq
    %v450 = vshrl.u32 %v449, 7
    %v451 = vsub.s32 2, %v450
    %v452 = vrot.slane %v439, %v451
    %456 = vmatprep.subr.mxu0 %v152
    %457 = vmatpush1.msra.mxu0 %v151
    %458 = vmatprep.subr.mxu0 %v155
    %459 = vmatpush1.msra.mxu0 %v154
    %460 = vmatprep.subr.mxu0 %v158
    %461 = vmatpush1.msra.mxu0 %v157
    %462 = vmatprep.subr.mxu0 %v161
    %463 = vmatpush1.msra.mxu0 %v160
    %464 = vmatprep.subr.mxu0 %v164
    %465 = vmatpush1.msra.mxu0 %v163
    %466 = vmatprep.subr.mxu0 %v167
    %467 = vmatpush1.msra.mxu0 %v166
    %468 = vmatprep.subr.mxu0 %v170
    %469 = vmatpush1.msra.mxu0 %v169
    %470 = vmatprep.subr.mxu0 %v173
    %471 = vmatpush1.msra.mxu0 %v172
    %472 = vmatprep.subr.mxu0 %v176
    %473 = vmatpush1.msra.mxu0 %v175
    %474 = vmatprep.subr.mxu0 %v179
    %475 = vmatpush1.msra.mxu0 %v178
    %476 = vmatprep.subr.mxu0 %v182
    %477 = vmatpush1.msra.mxu0 %v181
    %478 = vmatprep.subr.mxu0 %v185
    %479 = vmatpush1.msra.mxu0 %v184
    %480 = vmatprep.subr.mxu0 %v188
    %481 = vmatpush1.msra.mxu0 %v187
    %482 = vmatprep.subr.mxu0 %v191
    %483 = vmatpush1.msra.mxu0 %v190
    %484 = vmatprep.subr.mxu0 %v194
    %485 = vmatpush1.msra.mxu0 %v193
    %486 = vmatprep.subr.mxu0 %v197
    %487 = vmatpush1.msra.mxu0 %v196
    %488 = vmatprep.subr.mxu0 %v200
    %489 = vmatpush1.msra.mxu0 %v199
    %490 = vmatprep.subr.mxu0 %v203
    %491 = vmatpush1.msra.mxu0 %v202
    %492 = vmatprep.subr.mxu0 %v206
    %493 = vmatpush1.msra.mxu0 %v205
    %494 = vmatprep.subr.mxu0 %v209
    %495 = vmatpush1.msra.mxu0 %v208
    %496 = vmatprep.subr.mxu0 %v212
    %497 = vmatpush1.msra.mxu0 %v211
    %498 = vmatprep.subr.mxu0 %v215
    %499 = vmatpush1.msra.mxu0 %v214
    %500 = vmatprep.subr.mxu0 %v218
    %501 = vmatpush1.msra.mxu0 %v217
    %502 = vmatprep.subr.mxu0 %v221
    %503 = vmatpush1.msra.mxu0 %v220
    %504 = vmatprep.subr.mxu0 %v224
    %505 = vmatpush1.msra.mxu0 %v223
    %506 = vmatprep.subr.mxu0 %v227
    %507 = vmatpush1.msra.mxu0 %v226
    %508 = vmatprep.subr.mxu0 %v230
    %509 = vmatpush1.msra.mxu0 %v229
    %510 = vmatprep.subr.mxu0 %v233
    %511 = vmatpush1.msra.mxu0 %v232
    %512 = vmatprep.subr.mxu0 %v236
    %513 = vmatpush1.msra.mxu0 %v235
    %514 = vmatprep.subr.mxu0 %v239
    %515 = vmatpush1.msra.mxu0 %v238
    %516 = vmatprep.subr.mxu0 %v242
    %517 = vmatpush1.msra.mxu0 %v241
    %518 = vmatprep.subr.mxu0 %v245
    %519 = vmatpush1.msra.mxu0 %v244
    %520 = vmatprep.mubr.f32.mxu0 %v146
    %521 = vmatmul.mubr.f32.gmra.mrb[0].mxu0 %v145
    %v522 = vpop.f32.mrb[0].mxu0
    %v523 = vadd.f32 %v444, %v522
    %v524 = vpop.f32.mrb[0].mxu0
    %v525 = vadd.f32 %v448, %v524
    %526 = vdwg.mxu0
    %527 = vmatprep.subr.mxu0 %v248
    %528 = vmatpush1.msra.mxu0 %v247
    %529 = vmatprep.subr.mxu0 %v251
    %530 = vmatpush1.msra.mxu0 %v250
    %531 = vmatprep.subr.mxu0 %v254
    %532 = vmatpush1.msra.mxu0 %v253
    %533 = vmatprep.subr.mxu0 %v257
    %534 = vmatpush1.msra.mxu0 %v256
    %535 = vmatprep.subr.mxu0 %v260
    %536 = vmatpush1.msra.mxu0 %v259
    %537 = vmatprep.subr.mxu0 %v263
    %538 = vmatpush1.msra.mxu0 %v262
    %539 = vmatprep.subr.mxu0 %v266
    %540 = vmatpush1.msra.mxu0 %v265
    %541 = vmatprep.subr.mxu0 %v269
    %542 = vmatpush1.msra.mxu0 %v268
    %543 = vmatprep.subr.mxu0 %v272
    %544 = vmatpush1.msra.mxu0 %v271
    %545 = vmatprep.subr.mxu0 %v275
    %546 = vmatpush1.msra.mxu0 %v274
    %547 = vmatprep.subr.mxu0 %v278
    %548 = vmatpush1.msra.mxu0 %v277
    %549 = vmatprep.subr.mxu0 %v281
    %550 = vmatpush1.msra.mxu0 %v280
    %551 = vmatprep.subr.mxu0 %v284
    %552 = vmatpush1.msra.mxu0 %v283
    %553 = vmatprep.subr.mxu0 %v287
    %554 = vmatpush1.msra.mxu0 %v286
    %555 = vmatprep.subr.mxu0 %v290
    %556 = vmatpush1.msra.mxu0 %v289
    %557 = vmatprep.subr.mxu0 %v293
    %558 = vmatpush1.msra.mxu0 %v292
    %559 = vmatprep.subr.mxu0 %v296
    %560 = vmatpush1.msra.mxu0 %v295
    %561 = vmatprep.subr.mxu0 %v299
    %562 = vmatpush1.msra.mxu0 %v298
    %563 = vmatprep.subr.mxu0 %v302
    %564 = vmatpush1.msra.mxu0 %v301
    %565 = vmatprep.subr.mxu0 %v305
    %566 = vmatpush1.msra.mxu0 %v304
    %567 = vmatprep.subr.mxu0 %v308
    %568 = vmatpush1.msra.mxu0 %v307
    %569 = vmatprep.subr.mxu0 %v311
    %570 = vmatpush1.msra.mxu0 %v310
    %571 = vmatprep.subr.mxu0 %v314
    %572 = vmatpush1.msra.mxu0 %v313
    %573 = vmatprep.subr.mxu0 %v317
    %574 = vmatpush1.msra.mxu0 %v316
    %575 = vmatprep.subr.mxu0 %v320
    %576 = vmatpush1.msra.mxu0 %v319
    %577 = vmatprep.subr.mxu0 %v323
    %578 = vmatpush1.msra.mxu0 %v322
    %579 = vmatprep.subr.mxu0 %v326
    %580 = vmatpush1.msra.mxu0 %v325
    %581 = vmatprep.subr.mxu0 %v329
    %582 = vmatpush1.msra.mxu0 %v328
    %583 = vmatprep.subr.mxu0 %v332
    %584 = vmatpush1.msra.mxu0 %v331
    %585 = vmatprep.subr.mxu0 %v335
    %586 = vmatpush1.msra.mxu0 %v334
    %587 = vmatprep.subr.mxu0 %v338
    %588 = vmatpush1.msra.mxu0 %v337
    %589 = vmatprep.subr.mxu0 %v341
    %590 = vmatpush1.msra.mxu0 %v340
    %591 = vmatprep.mubr.f32.mxu0 %v148
    %592 = vmatmul.mubr.f32.gmra.mrb[0].mxu0 %v147
    %v593 = vpop.f32.mrb[0].mxu0
    %v594 = vadd.f32 %v523, %v593
    %v595 = vpop.f32.mrb[0].mxu0
    %v596 = vadd.f32 %v525, %v595
    %597 = vdwg.mxu0
    %598 = vmatprep.subr.mxu0 %v344
    %599 = vmatpush1.msra.mxu0 %v343
    %600 = vmatprep.subr.mxu0 %v347
    %601 = vmatpush1.msra.mxu0 %v346
    %602 = vmatprep.subr.mxu0 %v350
    %603 = vmatpush1.msra.mxu0 %v349
    %604 = vmatprep.subr.mxu0 %v353
    %605 = vmatpush1.msra.mxu0 %v352
    %606 = vmatprep.subr.mxu0 %v356
    %607 = vmatpush1.msra.mxu0 %v355
    %608 = vmatprep.subr.mxu0 %v359
    %609 = vmatpush1.msra.mxu0 %v358
    %610 = vmatprep.subr.mxu0 %v362
    %611 = vmatpush1.msra.mxu0 %v361
    %612 = vmatprep.subr.mxu0 %v365
    %613 = vmatpush1.msra.mxu0 %v364
    %614 = vmatprep.subr.mxu0 %v368
    %615 = vmatpush1.msra.mxu0 %v367
    %616 = vmatprep.subr.mxu0 %v371
    %617 = vmatpush1.msra.mxu0 %v370
    %618 = vmatprep.subr.mxu0 %v374
    %619 = vmatpush1.msra.mxu0 %v373
    %620 = vmatprep.subr.mxu0 %v377
    %621 = vmatpush1.msra.mxu0 %v376
    %622 = vmatprep.subr.mxu0 %v380
    %623 = vmatpush1.msra.mxu0 %v379
    %624 = vmatprep.subr.mxu0 %v383
    %625 = vmatpush1.msra.mxu0 %v382
    %626 = vmatprep.subr.mxu0 %v386
    %627 = vmatpush1.msra.mxu0 %v385
    %628 = vmatprep.subr.mxu0 %v389
    %629 = vmatpush1.msra.mxu0 %v388
    %630 = vmatprep.subr.mxu0 %v392
    %631 = vmatpush1.msra.mxu0 %v391
    %632 = vmatprep.subr.mxu0 %v395
    %633 = vmatpush1.msra.mxu0 %v394
    %634 = vmatprep.subr.mxu0 %v398
    %635 = vmatpush1.msra.mxu0 %v397
    %636 = vmatprep.subr.mxu0 %v401
    %637 = vmatpush1.msra.mxu0 %v400
    %638 = vmatprep.subr.mxu0 %v404
    %639 = vmatpush1.msra.mxu0 %v403
    %640 = vmatprep.subr.mxu0 %v407
    %641 = vmatpush1.msra.mxu0 %v406
    %642 = vmatprep.subr.mxu0 %v410
    %643 = vmatpush1.msra.mxu0 %v409
    %644 = vmatprep.subr.mxu0 %v413
    %645 = vmatpush1.msra.mxu0 %v412
    %646 = vmatprep.subr.mxu0 %v416
    %647 = vmatpush1.msra.mxu0 %v415
    %648 = vmatprep.subr.mxu0 %v419
    %649 = vmatpush1.msra.mxu0 %v418
    %650 = vmatprep.subr.mxu0 %v422
    %651 = vmatpush1.msra.mxu0 %v421
    %652 = vmatprep.subr.mxu0 %v425
    %653 = vmatpush1.msra.mxu0 %v424
    %654 = vmatprep.subr.mxu0 %v428
    %655 = vmatpush1.msra.mxu0 %v427
    %656 = vmatprep.subr.mxu0 %v431
    %657 = vmatpush1.msra.mxu0 %v430
    %658 = vmatprep.subr.mxu0 %v434
    %659 = vmatpush1.msra.mxu0 %v433
    %660 = vmatprep.subr.mxu0 %v437
    %661 = vmatpush1.msra.mxu0 %v436
    %662 = vmatprep.mubr.f32.mxu0 %v150
    %663 = vmatmul.mubr.f32.gmra.mrb[0].mxu0 %v149
    %v664 = vpop.f32.mrb[0].mxu0
    %v665 = vadd.f32 %v594, %v664
    %v666 = vpop.f32.mrb[0].mxu0
    %v667 = vadd.f32 %v596, %v666
    %668 = vdwg.mxu0
    %669 = vmatprep.subr.mxu0 0.0
    %670 = vmatpush1.msra.mxu0 %v153
    %671 = vmatprep.subr.mxu0 0.0
    %672 = vmatpush1.msra.mxu0 %v156
    %673 = vmatprep.subr.mxu0 0.0
    %674 = vmatpush1.msra.mxu0 %v159
    %675 = vmatprep.subr.mxu0 0.0
    %676 = vmatpush1.msra.mxu0 %v162
    %677 = vmatprep.subr.mxu0 0.0
    %678 = vmatpush1.msra.mxu0 %v165
    %679 = vmatprep.subr.mxu0 0.0
    %680 = vmatpush1.msra.mxu0 %v168
    %681 = vmatprep.subr.mxu0 0.0
    %682 = vmatpush1.msra.mxu0 %v171
    %683 = vmatprep.subr.mxu0 0.0
    %684 = vmatpush1.msra.mxu0 %v174
    %685 = vmatprep.subr.mxu0 0.0
    %686 = vmatpush1.msra.mxu0 %v177
    %687 = vmatprep.subr.mxu0 0.0
    %688 = vmatpush1.msra.mxu0 %v180
    %689 = vmatprep.subr.mxu0 0.0
    %690 = vmatpush1.msra.mxu0 %v183
    %691 = vmatprep.subr.mxu0 0.0
    %692 = vmatpush1.msra.mxu0 %v186
    %693 = vmatprep.subr.mxu0 0.0
    %694 = vmatpush1.msra.mxu0 %v189
    %695 = vmatprep.subr.mxu0 0.0
    %696 = vmatpush1.msra.mxu0 %v192
    %697 = vmatprep.subr.mxu0 0.0
    %698 = vmatpush1.msra.mxu0 %v195
    %699 = vmatprep.subr.mxu0 0.0
    %700 = vmatpush1.msra.mxu0 %v198
    %701 = vmatprep.subr.mxu0 0.0
    %702 = vmatpush1.msra.mxu0 %v201
    %703 = vmatprep.subr.mxu0 0.0
    %704 = vmatpush1.msra.mxu0 %v204
    %705 = vmatprep.subr.mxu0 0.0
    %706 = vmatpush1.msra.mxu0 %v207
    %707 = vmatprep.subr.mxu0 0.0
    %708 = vmatpush1.msra.mxu0 %v210
    %709 = vmatprep.subr.mxu0 0.0
    %710 = vmatpush1.msra.mxu0 %v213
    %711 = vmatprep.subr.mxu0 0.0
    %712 = vmatpush1.msra.mxu0 %v216
    %713 = vmatprep.subr.mxu0 0.0
    %714 = vmatpush1.msra.mxu0 %v219
    %715 = vmatprep.subr.mxu0 0.0
    %716 = vmatpush1.msra.mxu0 %v222
    %717 = vmatprep.subr.mxu0 0.0
    %718 = vmatpush1.msra.mxu0 %v225
    %719 = vmatprep.subr.mxu0 0.0
    %720 = vmatpush1.msra.mxu0 %v228
    %721 = vmatprep.subr.mxu0 0.0
    %722 = vmatpush1.msra.mxu0 %v231
    %723 = vmatprep.subr.mxu0 0.0
    %724 = vmatpush1.msra.mxu0 %v234
    %725 = vmatprep.subr.mxu0 0.0
    %726 = vmatpush1.msra.mxu0 %v237
    %727 = vmatprep.subr.mxu0 0.0
    %728 = vmatpush1.msra.mxu0 %v240
    %729 = vmatprep.subr.mxu0 0.0
    %730 = vmatpush1.msra.mxu0 %v243
    %731 = vmatprep.subr.mxu0 0.0
    %732 = vmatpush1.msra.mxu0 %v246
    %733 = vmatprep.mubr.f32.mxu0 %v146
    %734 = vmatmul.mubr.f32.gmra.mrb[0].mxu0 %v145
    %v735 = vpop.f32.mrb[0].mxu0
    %v736 = vadd.f32 %v452, %v735
    %v737 = vpop.f32.mrb[0].mxu0
    %738 = vdwg.mxu0
    %739 = vmatprep.subr.mxu0 0.0
    %740 = vmatpush1.msra.mxu0 %v249
    %741 = vmatprep.subr.mxu0 0.0
    %742 = vmatpush1.msra.mxu0 %v252
    %743 = vmatprep.subr.mxu0 0.0
    %744 = vmatpush1.msra.mxu0 %v255
    %745 = vmatprep.subr.mxu0 0.0
    %746 = vmatpush1.msra.mxu0 %v258
    %747 = vmatprep.subr.mxu0 0.0
    %748 = vmatpush1.msra.mxu0 %v261
    %749 = vmatprep.subr.mxu0 0.0
    %750 = vmatpush1.msra.mxu0 %v264
    %751 = vmatprep.subr.mxu0 0.0
    %752 = vmatpush1.msra.mxu0 %v267
    %753 = vmatprep.subr.mxu0 0.0
    %754 = vmatpush1.msra.mxu0 %v270
    %755 = vmatprep.subr.mxu0 0.0
    %756 = vmatpush1.msra.mxu0 %v273
    %757 = vmatprep.subr.mxu0 0.0
    %758 = vmatpush1.msra.mxu0 %v276
    %759 = vmatprep.subr.mxu0 0.0
    %760 = vmatpush1.msra.mxu0 %v279
    %761 = vmatprep.subr.mxu0 0.0
    %762 = vmatpush1.msra.mxu0 %v282
    %763 = vmatprep.subr.mxu0 0.0
    %764 = vmatpush1.msra.mxu0 %v285
    %765 = vmatprep.subr.mxu0 0.0
    %766 = vmatpush1.msra.mxu0 %v288
    %767 = vmatprep.subr.mxu0 0.0
    %768 = vmatpush1.msra.mxu0 %v291
    %769 = vmatprep.subr.mxu0 0.0
    %770 = vmatpush1.msra.mxu0 %v294
    %771 = vmatprep.subr.mxu0 0.0
    %772 = vmatpush1.msra.mxu0 %v297
    %773 = vmatprep.subr.mxu0 0.0
    %774 = vmatpush1.msra.mxu0 %v300
    %775 = vmatprep.subr.mxu0 0.0
    %776 = vmatpush1.msra.mxu0 %v303
    %777 = vmatprep.subr.mxu0 0.0
    %778 = vmatpush1.msra.mxu0 %v306
    %779 = vmatprep.subr.mxu0 0.0
    %780 = vmatpush1.msra.mxu0 %v309
    %781 = vmatprep.subr.mxu0 0.0
    %782 = vmatpush1.msra.mxu0 %v312
    %783 = vmatprep.subr.mxu0 0.0
    %784 = vmatpush1.msra.mxu0 %v315
    %785 = vmatprep.subr.mxu0 0.0
    %786 = vmatpush1.msra.mxu0 %v318
    %787 = vmatprep.subr.mxu0 0.0
    %788 = vmatpush1.msra.mxu0 %v321
    %789 = vmatprep.subr.mxu0 0.0
    %790 = vmatpush1.msra.mxu0 %v324
    %791 = vmatprep.subr.mxu0 0.0
    %792 = vmatpush1.msra.mxu0 %v327
    %793 = vmatprep.subr.mxu0 0.0
    %794 = vmatpush1.msra.mxu0 %v330
    %795 = vmatprep.subr.mxu0 0.0
    %796 = vmatpush1.msra.mxu0 %v333
    %797 = vmatprep.subr.mxu0 0.0
    %798 = vmatpush1.msra.mxu0 %v336
    %799 = vmatprep.subr.mxu0 0.0
    %800 = vmatpush1.msra.mxu0 %v339
    %801 = vmatprep.subr.mxu0 0.0
    %802 = vmatpush1.msra.mxu0 %v342
    %803 = vmatprep.mubr.f32.mxu0 %v148
    %804 = vmatmul.mubr.f32.gmra.mrb[0].mxu0 %v147
    %v805 = vpop.f32.mrb[0].mxu0
    %v806 = vadd.f32 %v736, %v805
    %v807 = vpop.f32.mrb[0].mxu0
    %808 = vdwg.mxu0
    %809 = vmatprep.subr.mxu0 0.0
    %810 = vmatpush1.msra.mxu0 %v345
    %811 = vmatprep.subr.mxu0 0.0
    %812 = vmatpush1.msra.mxu0 %v348
    %813 = vmatprep.subr.mxu0 0.0
    %814 = vmatpush1.msra.mxu0 %v351
    %815 = vmatprep.subr.mxu0 0.0
    %816 = vmatpush1.msra.mxu0 %v354
    %817 = vmatprep.subr.mxu0 0.0
    %818 = vmatpush1.msra.mxu0 %v357
    %819 = vmatprep.subr.mxu0 0.0
    %820 = vmatpush1.msra.mxu0 %v360
    %821 = vmatprep.subr.mxu0 0.0
    %822 = vmatpush1.msra.mxu0 %v363
    %823 = vmatprep.subr.mxu0 0.0
    %824 = vmatpush1.msra.mxu0 %v366
    %825 = vmatprep.subr.mxu0 0.0
    %826 = vmatpush1.msra.mxu0 %v369
    %827 = vmatprep.subr.mxu0 0.0
    %828 = vmatpush1.msra.mxu0 %v372
    %829 = vmatprep.subr.mxu0 0.0
    %830 = vmatpush1.msra.mxu0 %v375
    %831 = vmatprep.subr.mxu0 0.0
    %832 = vmatpush1.msra.mxu0 %v378
    %833 = vmatprep.subr.mxu0 0.0
    %834 = vmatpush1.msra.mxu0 %v381
    %835 = vmatprep.subr.mxu0 0.0
    %836 = vmatpush1.msra.mxu0 %v384
    %837 = vmatprep.subr.mxu0 0.0
    %838 = vmatpush1.msra.mxu0 %v387
    %839 = vmatprep.subr.mxu0 0.0
    %840 = vmatpush1.msra.mxu0 %v390
    %841 = vmatprep.subr.mxu0 0.0
    %842 = vmatpush1.msra.mxu0 %v393
    %843 = vmatprep.subr.mxu0 0.0
    %844 = vmatpush1.msra.mxu0 %v396
    %845 = vmatprep.subr.mxu0 0.0
    %846 = vmatpush1.msra.mxu0 %v399
    %847 = vmatprep.subr.mxu0 0.0
    %848 = vmatpush1.msra.mxu0 %v402
    %849 = vmatprep.subr.mxu0 0.0
    %850 = vmatpush1.msra.mxu0 %v405
    %851 = vmatprep.subr.mxu0 0.0
    %852 = vmatpush1.msra.mxu0 %v408
    %853 = vmatprep.subr.mxu0 0.0
    %854 = vmatpush1.msra.mxu0 %v411
    %855 = vmatprep.subr.mxu0 0.0
    %856 = vmatpush1.msra.mxu0 %v414
    %857 = vmatprep.subr.mxu0 0.0
    %858 = vmatpush1.msra.mxu0 %v417
    %859 = vmatprep.subr.mxu0 0.0
    %860 = vmatpush1.msra.mxu0 %v420
    %861 = vmatprep.subr.mxu0 0.0
    %862 = vmatpush1.msra.mxu0 %v423
    %863 = vmatprep.subr.mxu0 0.0
    %864 = vmatpush1.msra.mxu0 %v426
    %865 = vmatprep.subr.mxu0 0.0
    %866 = vmatpush1.msra.mxu0 %v429
    %867 = vmatprep.subr.mxu0 0.0
    %868 = vmatpush1.msra.mxu0 %v432
    %869 = vmatprep.subr.mxu0 0.0
    %870 = vmatpush1.msra.mxu0 %v435
    %871 = vmatprep.subr.mxu0 0.0
    %872 = vmatpush1.msra.mxu0 %v438
    %873 = vmatprep.mubr.f32.mxu0 %v150
    %874 = vmatmul.mubr.f32.gmra.mrb[0].mxu0 %v149
    %v875 = vpop.f32.mrb[0].mxu0
    %v876 = vadd.f32 %v806, %v875
    %v877 = vpop.f32.mrb[0].mxu0
    %878 = vdwg.mxu0
    %v879 = vmax.f32 %v665, 0.0
    %v880 = vmax.f32 %v667, 0.0
    %v881 = vmax.f32 %v876, 0.0
    %v882 = vld [vmem:[#allocation8] sm:$0xff]
    %v883 = vld [vmem:[#allocation8 + $0x8] sm:$0xff]
    %v884 = vld [vmem:[#allocation8 + $0x10] sm:$0xff]
    %v885 = vld [vmem:[#allocation8 + $0x18] sm:$0xff]
    %v886 = vld [vmem:[#allocation8 + $0x20] sm:$0xff]
    %v887 = vld [vmem:[#allocation8 + $0x28] sm:$0xff]
    %v888 = vld [vmem:[#allocation8 + $0x30] sm:$0xff]
    %v889 = vld [vmem:[#allocation8 + $0x38] sm:$0xff]
    %v890 = vld [vmem:[#allocation8 + $0x40] sm:$0xff]
    %v891 = vld [vmem:[#allocation8 + $0x48] sm:$0xff]
    %v892 = vld [vmem:[#allocation8 + $0x50] sm:$0xff]
    %v893 = vld [vmem:[#allocation8 + $0x58] sm:$0xff]
    %v894 = vld [vmem:[#allocation8 + $0x60] sm:$0xff]
    %v895 = vld [vmem:[#allocation8 + $0x68] sm:$0xff]
    %v896 = vld [vmem:[#allocation8 + $0x70] sm:$0xff]
    %v897 = vld [vmem:[#allocation8 + $0x78] sm:$0xff]
    %v898 = vld [vmem:[#allocation8 + $0x80] sm:$0xff]
    %v899 = vld [vmem:[#allocation8 + $0x88] sm:$0xff]
    %v900 = vld [vmem:[#allocation8 + $0x90] sm:$0xff]
    %v901 = vld [vmem:[#allocation8 + $0x98] sm:$0xff]
    %v902 = vld [vmem:[#allocation8 + $0xa0] sm:$0xff]
    %v903 = vld [vmem:[#allocation8 + $0xa8] sm:$0xff]
    %v904 = vld [vmem:[#allocation8 + $0xb0] sm:$0xff]
    %v905 = vld [vmem:[#allocation8 + $0xb8] sm:$0xff]
    %v906 = vld [vmem:[#allocation8 + $0xc0] sm:$0xff]
    %v907 = vld [vmem:[#allocation8 + $0xc8] sm:$0xff]
    %v908 = vld [vmem:[#allocation8 + $0xd0] sm:$0xff]
    %v909 = vld [vmem:[#allocation8 + $0xd8] sm:$0xff]
    %v910 = vld [vmem:[#allocation8 + $0xe0] sm:$0xff]
    %v911 = vld [vmem:[#allocation8 + $0xe8] sm:$0xff]
    %v912 = vld [vmem:[#allocation8 + $0xf0] sm:$0xff]
    %v913 = vld [vmem:[#allocation8 + $0xf8] sm:$0xff]
    %v914 = vld [vmem:[#allocation8 + $0x100] sm:$0xff]
    %v915 = vld [vmem:[#allocation8 + $0x108] sm:$0xff]
    %v916 = vld [vmem:[#allocation8 + $0x110] sm:$0xff]
    %v917 = vld [vmem:[#allocation8 + $0x118] sm:$0xff]
    %v918 = vld [vmem:[#allocation8 + $0x120] sm:$0xff]
    %v919 = vld [vmem:[#allocation8 + $0x128] sm:$0xff]
    %v920 = vld [vmem:[#allocation8 + $0x130] sm:$0xff]
    %v921 = vld [vmem:[#allocation8 + $0x138] sm:$0xff]
    %v922 = vld [vmem:[#allocation8 + $0x140] sm:$0xff]
    %v923 = vld [vmem:[#allocation8 + $0x148] sm:$0xff]
    %v924 = vld [vmem:[#allocation8 + $0x150] sm:$0xff]
    %v925 = vld [vmem:[#allocation8 + $0x158] sm:$0xff]
    %v926 = vld [vmem:[#allocation8 + $0x160] sm:$0xff]
    %v927 = vld [vmem:[#allocation8 + $0x168] sm:$0xff]
    %v928 = vld [vmem:[#allocation8 + $0x170] sm:$0xff]
    %v929 = vld [vmem:[#allocation8 + $0x178] sm:$0xff]
    %v930 = vld [vmem:[#allocation8 + $0x180] sm:$0xff]
    %v931 = vld [vmem:[#allocation8 + $0x188] sm:$0xff]
    %v932 = vld [vmem:[#allocation8 + $0x190] sm:$0xff]
    %v933 = vld [vmem:[#allocation8 + $0x198] sm:$0xff]
    %v934 = vld [vmem:[#allocation8 + $0x1a0] sm:$0xff]
    %v935 = vld [vmem:[#allocation8 + $0x1a8] sm:$0xff]
    %v936 = vld [vmem:[#allocation8 + $0x1b0] sm:$0xff]
    %v937 = vld [vmem:[#allocation8 + $0x1b8] sm:$0xff]
    %v938 = vld [vmem:[#allocation8 + $0x1c0] sm:$0xff]
    %v939 = vld [vmem:[#allocation8 + $0x1c8] sm:$0xff]
    %v940 = vld [vmem:[#allocation8 + $0x1d0] sm:$0xff]
    %v941 = vld [vmem:[#allocation8 + $0x1d8] sm:$0xff]
    %v942 = vld [vmem:[#allocation8 + $0x1e0] sm:$0xff]
    %v943 = vld [vmem:[#allocation8 + $0x1e8] sm:$0xff]
    %v944 = vld [vmem:[#allocation8 + $0x1f0] sm:$0xff]
    %v945 = vld [vmem:[#allocation8 + $0x1f8] sm:$0xff]
    %v946 = vld [vmem:[#allocation8 + $0x200] sm:$0xff]
    %v947 = vld [vmem:[#allocation8 + $0x208] sm:$0xff]
    %v948 = vld [vmem:[#allocation8 + $0x210] sm:$0xff]
    %v949 = vld [vmem:[#allocation8 + $0x218] sm:$0xff]
    %v950 = vld [vmem:[#allocation8 + $0x220] sm:$0xff]
    %v951 = vld [vmem:[#allocation8 + $0x228] sm:$0xff]
    %v952 = vld [vmem:[#allocation8 + $0x230] sm:$0xff]
    %v953 = vld [vmem:[#allocation8 + $0x238] sm:$0xff]
    %v954 = vld [vmem:[#allocation8 + $0x240] sm:$0xff]
    %v955 = vld [vmem:[#allocation8 + $0x248] sm:$0xff]
    %v956 = vld [vmem:[#allocation8 + $0x250] sm:$0xff]
    %v957 = vld [vmem:[#allocation8 + $0x258] sm:$0xff]
    %v958 = vld [vmem:[#allocation8 + $0x260] sm:$0xff]
    %v959 = vld [vmem:[#allocation8 + $0x268] sm:$0xff]
    %v960 = vld [vmem:[#allocation8 + $0x270] sm:$0xff]
    %v961 = vld [vmem:[#allocation8 + $0x278] sm:$0xff]
    %v962 = vld [vmem:[#allocation8 + $0x280] sm:$0xff]
    %v963 = vld [vmem:[#allocation8 + $0x288] sm:$0xff]
    %v964 = vld [vmem:[#allocation8 + $0x290] sm:$0xff]
    %v965 = vld [vmem:[#allocation8 + $0x298] sm:$0xff]
    %v966 = vld [vmem:[#allocation8 + $0x2a0] sm:$0xff]
    %v967 = vld [vmem:[#allocation8 + $0x2a8] sm:$0xff]
    %v968 = vld [vmem:[#allocation8 + $0x2b0] sm:$0xff]
    %v969 = vld [vmem:[#allocation8 + $0x2b8] sm:$0xff]
    %v970 = vld [vmem:[#allocation8 + $0x2c0] sm:$0xff]
    %v971 = vld [vmem:[#allocation8 + $0x2c8] sm:$0xff]
    %v972 = vld [vmem:[#allocation8 + $0x2d0] sm:$0xff]
    %v973 = vld [vmem:[#allocation8 + $0x2d8] sm:$0xff]
    %v974 = vld [vmem:[#allocation8 + $0x2e0] sm:$0xff]
    %v975 = vld [vmem:[#allocation8 + $0x2e8] sm:$0xff]
    %v976 = vld [vmem:[#allocation8 + $0x2f0] sm:$0xff]
    %v977 = vld [vmem:[#allocation8 + $0x2f8] sm:$0xff]
    %v978 = vld [vmem:[#allocation10] sm:$0x3]
    %v980 = vlaneseq
    %v981 = vshrl.u32 %v980, 7
    %v982 = vsub.s32 0, %v981
    %v983 = vrot.slane %v978, %v982
    %v984 = vlaneseq
    %v985 = vshrl.u32 %v984, 7
    %v986 = vsub.s32 1, %v985
    %v987 = vrot.slane %v978, %v986
    %990 = vmatprep.subr.mxu0 %v883
    %991 = vmatpush1.msra.mxu0 %v882
    %992 = vmatprep.subr.mxu0 %v885
    %993 = vmatpush1.msra.mxu0 %v884
    %994 = vmatprep.subr.mxu0 %v887
    %995 = vmatpush1.msra.mxu0 %v886
    %996 = vmatprep.subr.mxu0 %v889
    %997 = vmatpush1.msra.mxu0 %v888
    %998 = vmatprep.subr.mxu0 %v891
    %999 = vmatpush1.msra.mxu0 %v890
    %1000 = vmatprep.subr.mxu0 %v893
    %1001 = vmatpush1.msra.mxu0 %v892
    %1002 = vmatprep.subr.mxu0 %v895
    %1003 = vmatpush1.msra.mxu0 %v894
    %1004 = vmatprep.subr.mxu0 %v897
    %1005 = vmatpush1.msra.mxu0 %v896
    %1006 = vmatprep.subr.mxu0 %v899
    %1007 = vmatpush1.msra.mxu0 %v898
    %1008 = vmatprep.subr.mxu0 %v901
    %1009 = vmatpush1.msra.mxu0 %v900
    %1010 = vmatprep.subr.mxu0 %v903
    %1011 = vmatpush1.msra.mxu0 %v902
    %1012 = vmatprep.subr.mxu0 %v905
    %1013 = vmatpush1.msra.mxu0 %v904
    %1014 = vmatprep.subr.mxu0 %v907
    %1015 = vmatpush1.msra.mxu0 %v906
    %1016 = vmatprep.subr.mxu0 %v909
    %1017 = vmatpush1.msra.mxu0 %v908
    %1018 = vmatprep.subr.mxu0 %v911
    %1019 = vmatpush1.msra.mxu0 %v910
    %1020 = vmatprep.subr.mxu0 %v913
    %1021 = vmatpush1.msra.mxu0 %v912
    %1022 = vmatprep.subr.mxu0 %v915
    %1023 = vmatpush1.msra.mxu0 %v914
    %1024 = vmatprep.subr.mxu0 %v917
    %1025 = vmatpush1.msra.mxu0 %v916
    %1026 = vmatprep.subr.mxu0 %v919
    %1027 = vmatpush1.msra.mxu0 %v918
    %1028 = vmatprep.subr.mxu0 %v921
    %1029 = vmatpush1.msra.mxu0 %v920
    %1030 = vmatprep.subr.mxu0 %v923
    %1031 = vmatpush1.msra.mxu0 %v922
    %1032 = vmatprep.subr.mxu0 %v925
    %1033 = vmatpush1.msra.mxu0 %v924
    %1034 = vmatprep.subr.mxu0 %v927
    %1035 = vmatpush1.msra.mxu0 %v926
    %1036 = vmatprep.subr.mxu0 %v929
    %1037 = vmatpush1.msra.mxu0 %v928
    %1038 = vmatprep.subr.mxu0 %v931
    %1039 = vmatpush1.msra.mxu0 %v930
    %1040 = vmatprep.subr.mxu0 %v933
    %1041 = vmatpush1.msra.mxu0 %v932
    %1042 = vmatprep.subr.mxu0 %v935
    %1043 = vmatpush1.msra.mxu0 %v934
    %1044 = vmatprep.subr.mxu0 %v937
    %1045 = vmatpush1.msra.mxu0 %v936
    %1046 = vmatprep.subr.mxu0 %v939
    %1047 = vmatpush1.msra.mxu0 %v938
    %1048 = vmatprep.subr.mxu0 %v941
    %1049 = vmatpush1.msra.mxu0 %v940
    %1050 = vmatprep.subr.mxu0 %v943
    %1051 = vmatpush1.msra.mxu0 %v942
    %1052 = vmatprep.subr.mxu0 %v945
    %1053 = vmatpush1.msra.mxu0 %v944
    %1054 = vmatprep.mubr.f32.mxu0 %v880
    %1055 = vmatmul.mubr.f32.gmra.mrb[0].mxu0 %v879
    %v1056 = vpop.f32.mrb[0].mxu0
    %v1057 = vadd.f32 %v983, %v1056
    %v1058 = vpop.f32.mrb[0].mxu0
    %v1059 = vadd.f32 %v987, %v1058
    %1060 = vdwg.mxu0
    %1061 = vmatprep.subr.mxu0 %v947
    %1062 = vmatpush1.msra.mxu0 %v946
    %1063 = vmatprep.subr.mxu0 %v949
    %1064 = vmatpush1.msra.mxu0 %v948
    %1065 = vmatprep.subr.mxu0 %v951
    %1066 = vmatpush1.msra.mxu0 %v950
    %1067 = vmatprep.subr.mxu0 %v953
    %1068 = vmatpush1.msra.mxu0 %v952
    %1069 = vmatprep.subr.mxu0 %v955
    %1070 = vmatpush1.msra.mxu0 %v954
    %1071 = vmatprep.subr.mxu0 %v957
    %1072 = vmatpush1.msra.mxu0 %v956
    %1073 = vmatprep.subr.mxu0 %v959
    %1074 = vmatpush1.msra.mxu0 %v958
    %1075 = vmatprep.subr.mxu0 %v961
    %1076 = vmatpush1.msra.mxu0 %v960
    %1077 = vmatprep.subr.mxu0 %v963
    %1078 = vmatpush1.msra.mxu0 %v962
    %1079 = vmatprep.subr.mxu0 %v965
    %1080 = vmatpush1.msra.mxu0 %v964
    %1081 = vmatprep.subr.mxu0 %v967
    %1082 = vmatpush1.msra.mxu0 %v966
    %1083 = vmatprep.subr.mxu0 %v969
    %1084 = vmatpush1.msra.mxu0 %v968
    %1085 = vmatprep.subr.mxu0 %v971
    %1086 = vmatpush1.msra.mxu0 %v970
    %1087 = vmatprep.subr.mxu0 %v973
    %1088 = vmatpush1.msra.mxu0 %v972
    %1089 = vmatprep.subr.mxu0 %v975
    %1090 = vmatpush1.msra.mxu0 %v974
    %1091 = vmatprep.subr.mxu0 %v977
    %1092 = vmatpush1.msra.mxu0 %v976
    %1093 = vmatprep.subr.mxu0 0.0
    %1094 = vmatpush1.msra.mxu0 0.0
    %1095 = vmatprep.subr.mxu0 0.0
    %1096 = vmatpush1.msra.mxu0 0.0
    %1097 = vmatprep.subr.mxu0 0.0
    %1098 = vmatpush1.msra.mxu0 0.0
    %1099 = vmatprep.subr.mxu0 0.0
    %1100 = vmatpush1.msra.mxu0 0.0
    %1101 = vmatprep.subr.mxu0 0.0
    %1102 = vmatpush1.msra.mxu0 0.0
    %1103 = vmatprep.subr.mxu0 0.0
    %1104 = vmatpush1.msra.mxu0 0.0
    %1105 = vmatprep.subr.mxu0 0.0
    %1106 = vmatpush1.msra.mxu0 0.0
    %1107 = vmatprep.subr.mxu0 0.0
    %1108 = vmatpush1.msra.mxu0 0.0
    %1109 = vmatprep.subr.mxu0 0.0
    %1110 = vmatpush1.msra.mxu0 0.0
    %1111 = vmatprep.subr.mxu0 0.0
    %1112 = vmatpush1.msra.mxu0 0.0
    %1113 = vmatprep.subr.mxu0 0.0
    %1114 = vmatpush1.msra.mxu0 0.0
    %1115 = vmatprep.subr.mxu0 0.0
    %1116 = vmatpush1.msra.mxu0 0.0
    %1117 = vmatprep.subr.mxu0 0.0
    %1118 = vmatpush1.msra.mxu0 0.0
    %1119 = vmatprep.subr.mxu0 0.0
    %1120 = vmatpush1.msra.mxu0 0.0
    %1121 = vmatprep.subr.mxu0 0.0
    %1122 = vmatpush1.msra.mxu0 0.0
    %1123 = vmatprep.subr.mxu0 0.0
    %1124 = vmatpush1.msra.mxu0 0.0
    %1125 = vmatprep.mubr.f32.mxu0 0.0
    %1126 = vmatmul.mubr.f32.gmra.mrb[0].mxu0 %v881
    %v1127 = vpop.f32.mrb[0].mxu0
    %v1128 = vadd.f32 %v1057, %v1127
    %v1129 = vpop.f32.mrb[0].mxu0
    %v1130 = vadd.f32 %v1059, %v1129
    %1131 = vdwg.mxu0
    %v1132 = vmax.f32 %v1128, 0.0
    %v1133 = vmax.f32 %v1130, 0.0
    %v1134 = vld [vmem:[#allocation11] sm:$0xff]
    %v1135 = vld [vmem:[#allocation11 + $0x8] sm:$0xff]
    %v1136 = vld [vmem:[#allocation11 + $0x10] sm:$0xff]
    %v1137 = vld [vmem:[#allocation11 + $0x18] sm:$0xff]
    %v1138 = vld [vmem:[#allocation11 + $0x20] sm:$0xff]
    %v1139 = vld [vmem:[#allocation11 + $0x28] sm:$0xff]
    %v1140 = vld [vmem:[#allocation11 + $0x30] sm:$0xff]
    %v1141 = vld [vmem:[#allocation11 + $0x38] sm:$0xff]
    %v1142 = vld [vmem:[#allocation11 + $0x40] sm:$0xff]
    %v1143 = vld [vmem:[#allocation11 + $0x48] sm:$0xff]
    %v1144 = vld [vmem:[#allocation11 + $0x50] sm:$0xff]
    %v1145 = vld [vmem:[#allocation11 + $0x58] sm:$0xff]
    %v1146 = vld [vmem:[#allocation11 + $0x60] sm:$0xff]
    %v1147 = vld [vmem:[#allocation11 + $0x68] sm:$0xff]
    %v1148 = vld [vmem:[#allocation11 + $0x70] sm:$0xff]
    %v1149 = vld [vmem:[#allocation11 + $0x78] sm:$0xff]
    %v1150 = vld [vmem:[#allocation11 + $0x80] sm:$0xff]
    %v1151 = vld [vmem:[#allocation11 + $0x88] sm:$0xff]
    %v1152 = vld [vmem:[#allocation11 + $0x90] sm:$0xff]
    %v1153 = vld [vmem:[#allocation11 + $0x98] sm:$0xff]
    %v1154 = vld [vmem:[#allocation11 + $0xa0] sm:$0xff]
    %v1155 = vld [vmem:[#allocation11 + $0xa8] sm:$0xff]
    %v1156 = vld [vmem:[#allocation11 + $0xb0] sm:$0xff]
    %v1157 = vld [vmem:[#allocation11 + $0xb8] sm:$0xff]
    %v1158 = vld [vmem:[#allocation11 + $0xc0] sm:$0xff]
    %v1159 = vld [vmem:[#allocation11 + $0xc8] sm:$0xff]
    %v1160 = vld [vmem:[#allocation11 + $0xd0] sm:$0xff]
    %v1161 = vld [vmem:[#allocation11 + $0xd8] sm:$0xff]
    %v1162 = vld [vmem:[#allocation11 + $0xe0] sm:$0xff]
    %v1163 = vld [vmem:[#allocation11 + $0xe8] sm:$0xff]
    %v1164 = vld [vmem:[#allocation11 + $0xf0] sm:$0xff]
    %v1165 = vld [vmem:[#allocation11 + $0xf8] sm:$0xff]
    %v1166 = vld [vmem:[#allocation13] sm:$0x1]
    %v1168 = vlaneseq
    %v1169 = vshrl.u32 %v1168, 7
    %v1170 = vsub.s32 0, %v1169
    %v1171 = vrot.slane %v1166, %v1170
    %1173 = vmatprep.subr.mxu0 0.0
    %1174 = vmatpush1.msra.mxu0 %v1134
    %1175 = vmatprep.subr.mxu0 0.0
    %1176 = vmatpush1.msra.mxu0 %v1135
    %1177 = vmatprep.subr.mxu0 0.0
    %1178 = vmatpush1.msra.mxu0 %v1136
    %1179 = vmatprep.subr.mxu0 0.0
    %1180 = vmatpush1.msra.mxu0 %v1137
    %1181 = vmatprep.subr.mxu0 0.0
    %1182 = vmatpush1.msra.mxu0 %v1138
    %1183 = vmatprep.subr.mxu0 0.0
    %1184 = vmatpush1.msra.mxu0 %v1139
    %1185 = vmatprep.subr.mxu0 0.0
    %1186 = vmatpush1.msra.mxu0 %v1140
    %1187 = vmatprep.subr.mxu0 0.0
    %1188 = vmatpush1.msra.mxu0 %v1141
    %1189 = vmatprep.subr.mxu0 0.0
    %1190 = vmatpush1.msra.mxu0 %v1142
    %1191 = vmatprep.subr.mxu0 0.0
    %1192 = vmatpush1.msra.mxu0 %v1143
    %1193 = vmatprep.subr.mxu0 0.0
    %1194 = vmatpush1.msra.mxu0 %v1144
    %1195 = vmatprep.subr.mxu0 0.0
    %1196 = vmatpush1.msra.mxu0 %v1145
    %1197 = vmatprep.subr.mxu0 0.0
    %1198 = vmatpush1.msra.mxu0 %v1146
    %1199 = vmatprep.subr.mxu0 0.0
    %1200 = vmatpush1.msra.mxu0 %v1147
    %1201 = vmatprep.subr.mxu0 0.0
    %1202 = vmatpush1.msra.mxu0 %v1148
    %1203 = vmatprep.subr.mxu0 0.0
    %1204 = vmatpush1.msra.mxu0 %v1149
    %1205 = vmatprep.subr.mxu0 0.0
    %1206 = vmatpush1.msra.mxu0 %v1150
    %1207 = vmatprep.subr.mxu0 0.0
    %1208 = vmatpush1.msra.mxu0 %v1151
    %1209 = vmatprep.subr.mxu0 0.0
    %1210 = vmatpush1.msra.mxu0 %v1152
    %1211 = vmatprep.subr.mxu0 0.0
    %1212 = vmatpush1.msra.mxu0 %v1153
    %1213 = vmatprep.subr.mxu0 0.0
    %1214 = vmatpush1.msra.mxu0 %v1154
    %1215 = vmatprep.subr.mxu0 0.0
    %1216 = vmatpush1.msra.mxu0 %v1155
    %1217 = vmatprep.subr.mxu0 0.0
    %1218 = vmatpush1.msra.mxu0 %v1156
    %1219 = vmatprep.subr.mxu0 0.0
    %1220 = vmatpush1.msra.mxu0 %v1157
    %1221 = vmatprep.subr.mxu0 0.0
    %1222 = vmatpush1.msra.mxu0 %v1158
    %1223 = vmatprep.subr.mxu0 0.0
    %1224 = vmatpush1.msra.mxu0 %v1159
    %1225 = vmatprep.subr.mxu0 0.0
    %1226 = vmatpush1.msra.mxu0 %v1160
    %1227 = vmatprep.subr.mxu0 0.0
    %1228 = vmatpush1.msra.mxu0 %v1161
    %1229 = vmatprep.subr.mxu0 0.0
    %1230 = vmatpush1.msra.mxu0 %v1162
    %1231 = vmatprep.subr.mxu0 0.0
    %1232 = vmatpush1.msra.mxu0 %v1163
    %1233 = vmatprep.subr.mxu0 0.0
    %1234 = vmatpush1.msra.mxu0 %v1164
    %1235 = vmatprep.subr.mxu0 0.0
    %1236 = vmatpush1.msra.mxu0 %v1165
    %1237 = vmatprep.mubr.f32.mxu0 %v1133
    %1238 = vmatmul.mubr.f32.gmra.mrb[0].mxu0 %v1132
    %v1239 = vpop.f32.mrb[0].mxu0
    %v1240 = vadd.f32 %v1171, %v1239
    %v1241 = vpop.f32.mrb[0].mxu0
    %1242 = vdwg.mxu0
    %v1243 = vmax.f32 %v1240, 0.0
    %v1244 = vld [vmem:[#allocation14] sm:$0xff]
    %v1245 = vld [vmem:[#allocation14 + $0x8] sm:$0xff]
    %v1246 = vld [vmem:[#allocation14 + $0x10] sm:$0xff]
    %v1247 = vld [vmem:[#allocation14 + $0x18] sm:$0xff]
    %v1248 = vld [vmem:[#allocation14 + $0x20] sm:$0xff]
    %v1249 = vld [vmem:[#allocation14 + $0x28] sm:$0xff]
    %v1250 = vld [vmem:[#allocation14 + $0x30] sm:$0xff]
    %v1251 = vld [vmem:[#allocation14 + $0x38] sm:$0xff]
    %v1252 = vld [vmem:[#allocation14 + $0x40] sm:$0xff]
    %v1253 = vld [vmem:[#allocation14 + $0x48] sm:$0xff]
    %v1254 = vld [vmem:[#allocation14 + $0x50] sm:$0xff]
    %v1255 = vld [vmem:[#allocation14 + $0x58] sm:$0xff]
    %v1256 = vld [vmem:[#allocation14 + $0x60] sm:$0xff]
    %v1257 = vld [vmem:[#allocation14 + $0x68] sm:$0xff]
    %v1258 = vld [vmem:[#allocation14 + $0x70] sm:$0xff]
    %v1259 = vld [vmem:[#allocation14 + $0x78] sm:$0xff]
    %v1260 = vld [vmem:[#allocation16] sm:$0x1]
    %v1262 = vlaneseq
    %v1263 = vshrl.u32 %v1262, 7
    %v1264 = vsub.s32 0, %v1263
    %v1265 = vrot.slane %v1260, %v1264
    %1267 = vmatprep.subr.mxu0 0.0
    %1268 = vmatpush1.msra.mxu0 %v1244
    %1269 = vmatprep.subr.mxu0 0.0
    %1270 = vmatpush1.msra.mxu0 %v1245
    %1271 = vmatprep.subr.mxu0 0.0
    %1272 = vmatpush1.msra.mxu0 %v1246
    %1273 = vmatprep.subr.mxu0 0.0
    %1274 = vmatpush1.msra.mxu0 %v1247
    %1275 = vmatprep.subr.mxu0 0.0
    %1276 = vmatpush1.msra.mxu0 %v1248
    %1277 = vmatprep.subr.mxu0 0.0
    %1278 = vmatpush1.msra.mxu0 %v1249
    %1279 = vmatprep.subr.mxu0 0.0
    %1280 = vmatpush1.msra.mxu0 %v1250
    %1281 = vmatprep.subr.mxu0 0.0
    %1282 = vmatpush1.msra.mxu0 %v1251
    %1283 = vmatprep.subr.mxu0 0.0
    %1284 = vmatpush1.msra.mxu0 %v1252
    %1285 = vmatprep.subr.mxu0 0.0
    %1286 = vmatpush1.msra.mxu0 %v1253
    %1287 = vmatprep.subr.mxu0 0.0
    %1288 = vmatpush1.msra.mxu0 %v1254
    %1289 = vmatprep.subr.mxu0 0.0
    %1290 = vmatpush1.msra.mxu0 %v1255
    %1291 = vmatprep.subr.mxu0 0.0
    %1292 = vmatpush1.msra.mxu0 %v1256
    %1293 = vmatprep.subr.mxu0 0.0
    %1294 = vmatpush1.msra.mxu0 %v1257
    %1295 = vmatprep.subr.mxu0 0.0
    %1296 = vmatpush1.msra.mxu0 %v1258
    %1297 = vmatprep.subr.mxu0 0.0
    %1298 = vmatpush1.msra.mxu0 %v1259
    %1299 = vmatprep.subr.mxu0 0.0
    %1300 = vmatpush1.msra.mxu0 0.0
    %1301 = vmatprep.subr.mxu0 0.0
    %1302 = vmatpush1.msra.mxu0 0.0
    %1303 = vmatprep.subr.mxu0 0.0
    %1304 = vmatpush1.msra.mxu0 0.0
    %1305 = vmatprep.subr.mxu0 0.0
    %1306 = vmatpush1.msra.mxu0 0.0
    %1307 = vmatprep.subr.mxu0 0.0
    %1308 = vmatpush1.msra.mxu0 0.0
    %1309 = vmatprep.subr.mxu0 0.0
    %1310 = vmatpush1.msra.mxu0 0.0
    %1311 = vmatprep.subr.mxu0 0.0
    %1312 = vmatpush1.msra.mxu0 0.0
    %1313 = vmatprep.subr.mxu0 0.0
    %1314 = vmatpush1.msra.mxu0 0.0
    %1315 = vmatprep.subr.mxu0 0.0
    %1316 = vmatpush1.msra.mxu0 0.0
    %1317 = vmatprep.subr.mxu0 0.0
    %1318 = vmatpush1.msra.mxu0 0.0
    %1319 = vmatprep.subr.mxu0 0.0
    %1320 = vmatpush1.msra.mxu0 0.0
    %1321 = vmatprep.subr.mxu0 0.0
    %1322 = vmatpush1.msra.mxu0 0.0
    %1323 = vmatprep.subr.mxu0 0.0
    %1324 = vmatpush1.msra.mxu0 0.0
    %1325 = vmatprep.subr.mxu0 0.0
    %1326 = vmatpush1.msra.mxu0 0.0
    %1327 = vmatprep.subr.mxu0 0.0
    %1328 = vmatpush1.msra.mxu0 0.0
    %1329 = vmatprep.subr.mxu0 0.0
    %1330 = vmatpush1.msra.mxu0 0.0
    %1331 = vmatprep.mubr.f32.mxu0 0.0
    %1332 = vmatmul.mubr.f32.gmra.mrb[0].mxu0 %v1243
    %v1333 = vpop.f32.mrb[0].mxu0
    %v1334 = vadd.f32 %v1265, %v1333
    %v1335 = vpop.f32.mrb[0].mxu0
    %1336 = vdwg.mxu0
    %1337 = vst [vmem:[#allocation17] sm:$0xff] %v1334
    // Predicated region
    $region74: #{tpu_custom_call.1} parent=1 // pred_check
      _
    $region75: #{tpu_custom_call.1} parent=1 // pred_check_branch
      %1339 = sbr.rel (0) target = $region77
    $region76: #{tpu_custom_call.1} parent=1 // pred_region
      %s1341 = ssub.s32 128, 128
      %1342 = vsyncadd [#allocation4], %s1341
      %s1344 = sshll.u32 [#allocation17], 4
      %s1345 = int_to_ptr.vmem [resolvable:$true] %s1344
      %1347 = dma.vmem_to_hbm [thread:$0]  %s1345, 128, %s9, [#allocation4]
    $region77: #{tpu_custom_call.1} parent=1 // pred_fallthru
      _
    // Predicated region
    $region78: #{tpu_custom_call.1} parent=1 // pred_check
      _
    $region79: #{tpu_custom_call.1} parent=1 // pred_check_branch
      %1349 = sbr.rel (0) target = $region81
    $region80: #{tpu_custom_call.1} parent=1 // pred_region
      %1350 = dma.done [#allocation4], 128
    $region81: #{tpu_custom_call.1} parent=1 // pred_fallthru
      _
    %1351 = vsyncpa [#allocation3], 1
    %1352 = vsyncpa [#allocation6], 1
    %1353 = vsyncpa [#allocation9], 1
    %1354 = vsyncpa [#allocation12], 1
    %1355 = vsyncpa [#allocation15], 1
    %1356 = vsyncpa [#allocation4], 1

</llo_original>
